<compile_context>
chip_gen: v7x
topology: tpu7x:2x2x1
jax: 0.10.0
libtpu: 0.0.40
codegen_flags: <defaults>
</compile_context>

<pallas_src>
import functools

import jax
import jax.numpy as jnp
from jax.experimental import pallas as pl
from jax.experimental.pallas import tpu as pltpu

LN_EPS = 1e-5
NEG_BIG = -1e30
# Safe on every generation (v7x physical VMEM = 64 MiB), above the 32 MiB default.
VMEM_LIMIT = 48 * 1024 * 1024


# --------------------------------------------------------------------------
# Stage 1: fused  FFN -> *mask -> DFSMN -> *mask      (grid over batch)
# Weights resident via constant index_maps; everything stays in VMEM.
# --------------------------------------------------------------------------
def _ffn_dfsmn_kernel(T, lorder,
                      x_ref, m_ref,
                      w1_ref, b1_ref, w2_ref, b2_ref, g1_ref, be1_ref,
                      wl_ref, bl_ref, wp_ref, wm_ref,
                      out2_ref):
    x = x_ref[0]                                               # (T, D)
    m = m_ref[0]                                               # (T, 1)

    # ---- PositionwiseFeedForward: LN(x + W2 relu(W1 x)) * mask ----
    h = jnp.maximum(
        jnp.dot(x, w1_ref[...], preferred_element_type=jnp.float32)
        + b1_ref[...], 0.0)
    y = jnp.dot(h, w2_ref[...], preferred_element_type=jnp.float32) + b2_ref[...]
    z = y + x
    mu = jnp.mean(z, axis=-1, keepdims=True)
    var = jnp.mean((z - mu) ** 2, axis=-1, keepdims=True)
    out1 = ((z - mu) * jax.lax.rsqrt(var + LN_EPS)
            * g1_ref[...] + be1_ref[...]) * m

    # ---- DFSMN unidirectional memory layer (reconstruction) ----
    f = jnp.maximum(
        jnp.dot(out1, wl_ref[...], preferred_element_type=jnp.float32)
        + bl_ref[...], 0.0)                                    # (T, d_inner)
    proj = jnp.dot(f, wp_ref[...], preferred_element_type=jnp.float32)  # (T, D)

    wm = wm_ref[...]                                           # (lorder, D)
    row = jax.lax.broadcasted_iota(jnp.int32, (T, 1), 0)
    n_taps = min(lorder, T)                                    # taps past T are zero
    NACC = 4                                                   # break serial add chain
    accs = [None] * NACC
    for j in range(n_taps):
        if j == 0:
            term = proj * wm[lorder - 1][None, :]              # current frame
        else:
            # look-back tap via sublane roll (XLU) + wrap mask
            term = (jnp.where(row >= j, pltpu.roll(proj, shift=j, axis=0), 0.0)
                    * wm[lorder - 1 - j][None, :])
        a = j % NACC
        accs[a] = term if accs[a] is None else accs[a] + term
    acc = accs[0]
    for a in accs[1:]:
        if a is not None:
            acc = acc + a
    out2_ref[0] = (proj + acc) * m


def ffn_dfsmn(x, non_pad_mask, p_ffn, p_dfs, lorder):
    B, T, D = x.shape
    d_inner = p_ffn["w1"].shape[1]
    kern = functools.partial(_ffn_dfsmn_kernel, T, lorder)
    const = lambda b: (0, 0)

    flops = int(B * T * (8 * D * d_inner + 2 * D * min(lorder, T) + 12 * D))
    bytes_acc = int(4 * (B * T * (2 * D + 1)                       # x, out2, mask
                         + 2 * (D * d_inner + d_inner)             # ffn/dfsmn linears
                         + 2 * (d_inner * D)
                         + lorder * D + 4 * D))
    cost = pl.CostEstimate(flops=flops, transcendentals=int(2 * B * T),
                           bytes_accessed=bytes_acc)

    out2 = pl.pallas_call(
        kern,
        out_shape=jax.ShapeDtypeStruct((B, T, D), jnp.float32),
        grid=(B,),
        in_specs=[
            pl.BlockSpec((1, T, D), lambda b: (b, 0, 0)),      # x
            pl.BlockSpec((1, T, 1), lambda b: (b, 0, 0)),      # non_pad_mask
            pl.BlockSpec((D, d_inner), const),                 # ffn w1 (in,out)
            pl.BlockSpec((1, d_inner), const),                 # ffn b1
            pl.BlockSpec((d_inner, D), const),                 # ffn w2
            pl.BlockSpec((1, D), const),                       # ffn b2
            pl.BlockSpec((1, D), const),                       # ffn gamma
            pl.BlockSpec((1, D), const),                       # ffn beta
            pl.BlockSpec((D, d_inner), const),                 # dfsmn w_lin
            pl.BlockSpec((1, d_inner), const),                 # dfsmn b_lin
            pl.BlockSpec((d_inner, D), const),                 # dfsmn w_proj
            pl.BlockSpec((lorder, D), const),                  # dfsmn w_mem
        ],
        out_specs=pl.BlockSpec((1, T, D), lambda b: (b, 0, 0)),
        compiler_params=pltpu.CompilerParams(
            dimension_semantics=("parallel",),
            vmem_limit_bytes=VMEM_LIMIT),
        cost_estimate=cost,
    )(x, non_pad_mask,
      p_ffn["w1"], p_ffn["b1"], p_ffn["w2"], p_ffn["b2"],
      p_ffn["gamma"], p_ffn["beta"],
      p_dfs["w_lin"], p_dfs["b_lin"], p_dfs["w_proj"], p_dfs["w_mem"])
    return out2


# --------------------------------------------------------------------------
# Stage 2: fused MultiHeadAttention
#   grid = (batch "parallel", head "arbitrary")
#   per step: Q/K/V projection for one head, softmax(scores)@V, partial fc
#   accumulated into VMEM scratch; last head applies +fc_b +residual, LN, mask.
# --------------------------------------------------------------------------
def _mha_kernel(inv_temp,
                x_ref, enc_ref, msk_ref, npm_ref,
                wq_ref, bq_ref, wk_ref, bk_ref, wv_ref, bv_ref,
                wfc_ref, bfc_ref, g_ref, be_ref,
                attn_ref, out_ref, acc_ref):
    h = pl.program_id(1)
    x = x_ref[0]                                               # (Tq, D) residual / q-input
    enc = enc_ref[0]                                           # (Tk, D)

    q = jnp.dot(x, wq_ref[0], preferred_element_type=jnp.float32) + bq_ref[0]
    k = jnp.dot(enc, wk_ref[0], preferred_element_type=jnp.float32) + bk_ref[0]
    v = jnp.dot(enc, wv_ref[0], preferred_element_type=jnp.float32) + bv_ref[0]

    s = jax.lax.dot_general(q, k, (((1,), (1,)), ((), ())),
                            preferred_element_type=jnp.float32) * inv_temp
    # large finite negative instead of -inf: avoids NaN on fully-masked rows
    s = jnp.where(msk_ref[0] != 0, NEG_BIG, s)
    s_max = jnp.max(s, axis=-1, keepdims=True)
    e = jnp.exp(s - s_max)
    p = e / jnp.sum(e, axis=-1, keepdims=True)                 # exact normalization
    attn_ref[0, 0] = p                                         # (Tq, Tk) per-head block

    ctx = jnp.dot(p, v, preferred_element_type=jnp.float32)    # (Tq, d_v)
    part = jnp.dot(ctx, wfc_ref[0], preferred_element_type=jnp.float32)  # (Tq, D)

    @pl.when(h == 0)
    def _():
        acc_ref[...] = part

    @pl.when(h > 0)
    def _():
        acc_ref[...] = acc_ref[...] + part

    @pl.when(h == pl.num_programs(1) - 1)
    def _():
        z = acc_ref[...] + bfc_ref[...] + x                    # fc bias + residual
        mu = jnp.mean(z, axis=-1, keepdims=True)
        var = jnp.mean((z - mu) ** 2, axis=-1, keepdims=True)
        zn = (z - mu) * jax.lax.rsqrt(var + LN_EPS)
        out_ref[0] = (zn * g_ref[...] + be_ref[...]) * npm_ref[0]


def mha_enc_attn(out2, enc_output, attn_mask_i8, non_pad_mask, p_mha,
                 n_head, d_k, d_v):
    B, Tq, D = out2.shape
    _, Tk, _ = enc_output.shape
    inv_temp = 1.0 / (float(d_k) ** 0.5)
    kern = functools.partial(_mha_kernel, inv_temp)

    batch_map = lambda b, h: (b, 0, 0)
    head_map = lambda b, h: (h, 0, 0)
    const_map = lambda b, h: (0, 0)

    flops = int(B * n_head * 2 * (Tq * D * d_k + Tk * D * d_k + Tk * D * d_v
                                  + Tq * Tk * d_k + Tq * Tk * d_v + Tq * d_v * D)
                + B * Tq * 8 * D)
    transc = int(B * n_head * Tq * Tk + B * Tq)
    bytes_acc = int(4 * (2 * B * Tq * D + B * Tk * D
                         + n_head * B * Tq * Tk
                         + B * n_head * (2 * D * d_k + D * d_v + d_v * D) + 3 * D)
                    + B * Tq * Tk)                              # int8 mask
    cost = pl.CostEstimate(flops=flops, transcendentals=transc,
                           bytes_accessed=bytes_acc)

    attn, out = pl.pallas_call(
        kern,
        out_shape=(jax.ShapeDtypeStruct((n_head, B, Tq, Tk), jnp.float32),
                   jax.ShapeDtypeStruct((B, Tq, D), jnp.float32)),
        grid=(B, n_head),
        in_specs=[
            pl.BlockSpec((1, Tq, D), batch_map),               # out2 (q-input / residual)
            pl.BlockSpec((1, Tk, D), batch_map),               # enc_output
            pl.BlockSpec((1, Tq, Tk), batch_map),              # attn mask (int8)
            pl.BlockSpec((1, Tq, 1), batch_map),               # non_pad_mask
            pl.BlockSpec((1, D, d_k), head_map),               # w_qs (head-major)
            pl.BlockSpec((1, 1, d_k), head_map),               # b_qs
            pl.BlockSpec((1, D, d_k), head_map),               # w_ks
            pl.BlockSpec((1, 1, d_k), head_map),               # b_ks
            pl.BlockSpec((1, D, d_v), head_map),               # w_vs
            pl.BlockSpec((1, 1, d_v), head_map),               # b_vs
            pl.BlockSpec((1, d_v, D), head_map),               # fc_w (head-major)
            pl.BlockSpec((1, D), const_map),                   # fc_b
            pl.BlockSpec((1, D), const_map),                   # gamma
            pl.BlockSpec((1, D), const_map),                   # beta
        ],
        out_specs=(
            pl.BlockSpec((1, 1, Tq, Tk), lambda b, h: (h, b, 0, 0)),
            pl.BlockSpec((1, Tq, D), batch_map),               # revisited across h
        ),
        scratch_shapes=[pltpu.VMEM((Tq, D), jnp.float32)],     # fc accumulator
        compiler_params=pltpu.CompilerParams(
            dimension_semantics=("parallel", "arbitrary"),
            vmem_limit_bytes=VMEM_LIMIT),
        cost_estimate=cost,
    )(out2, enc_output, attn_mask_i8, non_pad_mask,
      p_mha["w_qs"], p_mha["b_qs"], p_mha["w_ks"], p_mha["b_ks"],
      p_mha["w_vs"], p_mha["b_vs"], p_mha["fc_w"], p_mha["fc_b"],
      p_mha["gamma"], p_mha["beta"])
    return attn, out


# --------------------------------------------------------------------------
# DecoderLayer1 forward
# --------------------------------------------------------------------------
@functools.partial(jax.jit, static_argnames=("n_head", "d_k", "d_v", "lorder"))
def decoder_layer1_forward(params, dec_input, enc_output, non_pad_mask,
                           dec_enc_attn_mask, *, n_head, d_k, d_v, lorder):
    B, T, _ = dec_input.shape
    _, Tk, _ = enc_output.shape
    # fused FFN -> DFSMN (masked)
    out2 = ffn_dfsmn(dec_input, non_pad_mask, params["ffn"], params["dfsmn"],
                     lorder)
    # fused MHA: QKV proj + attention + fc + residual + LN + mask
    mask_i8 = dec_enc_attn_mask.astype(jnp.int8)
    attn, dec_output = mha_enc_attn(out2, enc_output, mask_i8, non_pad_mask,
                                    params["mha"], n_head, d_k, d_v)
    # head-major (n*b, lq, lk) like the PyTorch reference
    dec_enc_attn = attn.reshape(n_head * B, T, Tk)
    return dec_output, dec_enc_attn


def init_params(key, d_model, d_inner, n_head, d_k, d_v, lorder=20):
    # Weights are stored in exactly the layout the kernels consume:
    #   * matmul weights pre-transposed to (in, out)  -> no in-kernel transposes
    #   * MHA projection weights head-major (n_head, in, out_per_head)
    #   * biases / LN params as (1, dim) rows
    ks = jax.random.split(key, 12)

    def nrm(k, shape, scale=0.1):
        return jax.random.normal(k, shape, dtype=jnp.float32) * scale

    return {
        "ffn": {
            "w1": nrm(ks[0], (d_model, d_inner)),
            "b1": nrm(ks[1], (1, d_inner)),
            "w2": nrm(ks[2], (d_inner, d_model)),
            "b2": nrm(ks[3], (1, d_model)),
            "gamma": jnp.ones((1, d_model), jnp.float32),
            "beta": jnp.zeros((1, d_model), jnp.float32),
        },
        "dfsmn": {
            "w_lin": nrm(ks[4], (d_model, d_inner)),
            "b_lin": nrm(ks[5], (1, d_inner)),
            "w_proj": nrm(ks[6], (d_inner, d_model)),
            "w_mem": nrm(ks[7], (lorder, d_model)),
        },
        "mha": {
            "w_qs": nrm(ks[8], (n_head, d_model, d_k)),
            "b_qs": jnp.zeros((n_head, 1, d_k), jnp.float32),
            "w_ks": nrm(ks[9], (n_head, d_model, d_k)),
            "b_ks": jnp.zeros((n_head, 1, d_k), jnp.float32),
            "w_vs": nrm(ks[10], (n_head, d_model, d_v)),
            "b_vs": jnp.zeros((n_head, 1, d_v), jnp.float32),
            "fc_w": nrm(ks[11], (n_head, d_v, d_model)),
            "fc_b": jnp.zeros((1, d_model), jnp.float32),
            "gamma": jnp.ones((1, d_model), jnp.float32),
            "beta": jnp.zeros((1, d_model), jnp.float32),
        },
    }


if __name__ == "__main__":
    d_model, d_inner, n_head, d_k, d_v = 32, 64, 4, 8, 8
    B, T, T_enc, lorder = 2, 8, 8, 20

    key = jax.random.PRNGKey(0)
    kp, kx, ke = jax.random.split(key, 3)
    params = init_params(kp, d_model, d_inner, n_head, d_k, d_v, lorder)

    dec_input = jax.random.normal(kx, (B, T, d_model), dtype=jnp.float32)
    enc_output = jax.random.normal(ke, (B, T_enc, d_model), dtype=jnp.float32)
    # last two decoder positions of batch 1 are padding
    non_pad_mask = jnp.ones((B, T, 1), jnp.float32).at[1, -2:, :].set(0.0)
    # mask (1 => masked) the last two encoder positions for batch 1 (int8)
    dec_enc_attn_mask = jnp.zeros((B, T, T_enc), jnp.int8).at[1, :, -2:].set(1)

    dec_output, dec_enc_attn = decoder_layer1_forward(
        params, dec_input, enc_output, non_pad_mask, dec_enc_attn_mask,
        n_head=n_head, d_k=d_k, d_v=d_v, lorder=lorder)
    jax.block_until_ready((dec_output, dec_enc_attn))

    assert dec_output.shape == (B, T, d_model)
    assert dec_enc_attn.shape == (n_head * B, T, T_enc)
    assert bool(jnp.all(jnp.isfinite(dec_output)))
    assert bool(jnp.all(jnp.isfinite(dec_enc_attn)))
    print("KERNEL_OK")
</pallas_src>

<mosaic_0001>
module attributes {stable_mosaic.version = 11 : i64} {
  func.func @_ffn_dfsmn_kernel(%arg0: i32, %arg1: memref<1x8x32xf32, #tpu.memory_space<vmem>>, %arg2: memref<1x8x1xf32, #tpu.memory_space<vmem>>, %arg3: memref<32x64xf32, #tpu.memory_space<vmem>>, %arg4: memref<1x64xf32, #tpu.memory_space<vmem>>, %arg5: memref<64x32xf32, #tpu.memory_space<vmem>>, %arg6: memref<1x32xf32, #tpu.memory_space<vmem>>, %arg7: memref<1x32xf32, #tpu.memory_space<vmem>>, %arg8: memref<1x32xf32, #tpu.memory_space<vmem>>, %arg9: memref<32x64xf32, #tpu.memory_space<vmem>>, %arg10: memref<1x64xf32, #tpu.memory_space<vmem>>, %arg11: memref<64x32xf32, #tpu.memory_space<vmem>>, %arg12: memref<20x32xf32, #tpu.memory_space<vmem>>, %arg13: memref<1x8x32xf32, #tpu.memory_space<vmem>>) attributes {dimension_semantics = [#tpu.dimension_semantics<parallel>], iteration_bounds = array<i64: 2>, scalar_prefetch = 0 : i64, scratch_operands = 0 : i64, tpu.core_type = #tpu.core_type<tc>, window_params = [{transform_indices = @transform_0, window_bounds = array<i64: 1, 8, 32>}, {transform_indices = @transform_1, window_bounds = array<i64: 1, 8, 1>}, {pipeline_mode = #tpu.pipeline_mode<synchronous>, transform_indices = @transform_2, window_bounds = array<i64: 32, 64>}, {pipeline_mode = #tpu.pipeline_mode<synchronous>, transform_indices = @transform_3, window_bounds = array<i64: 1, 64>}, {pipeline_mode = #tpu.pipeline_mode<synchronous>, transform_indices = @transform_4, window_bounds = array<i64: 64, 32>}, {pipeline_mode = #tpu.pipeline_mode<synchronous>, transform_indices = @transform_5, window_bounds = array<i64: 1, 32>}, {pipeline_mode = #tpu.pipeline_mode<synchronous>, transform_indices = @transform_6, window_bounds = array<i64: 1, 32>}, {pipeline_mode = #tpu.pipeline_mode<synchronous>, transform_indices = @transform_7, window_bounds = array<i64: 1, 32>}, {pipeline_mode = #tpu.pipeline_mode<synchronous>, transform_indices = @transform_8, window_bounds = array<i64: 32, 64>}, {pipeline_mode = #tpu.pipeline_mode<synchronous>, transform_indices = @transform_9, window_bounds = array<i64: 1, 64>}, {pipeline_mode = #tpu.pipeline_mode<synchronous>, transform_indices = @transform_10, window_bounds = array<i64: 64, 32>}, {pipeline_mode = #tpu.pipeline_mode<synchronous>, transform_indices = @transform_11, window_bounds = array<i64: 20, 32>}, {transform_indices = @transform_12, window_bounds = array<i64: 1, 8, 32>}]} {
    %c0 = arith.constant 0 : index
    %c0_0 = arith.constant 0 : index
    %c0_1 = arith.constant 0 : index
    %0 = vector.load %arg1[%c0, %c0_0, %c0_1] : memref<1x8x32xf32, #tpu.memory_space<vmem>>, vector<1x8x32xf32>
    %1 = vector.shape_cast %0 : vector<1x8x32xf32> to vector<8x32xf32>
    %c0_2 = arith.constant 0 : index
    %c0_3 = arith.constant 0 : index
    %c0_4 = arith.constant 0 : index
    %2 = vector.load %arg2[%c0_2, %c0_3, %c0_4] : memref<1x8x1xf32, #tpu.memory_space<vmem>>, vector<1x8x1xf32>
    %3 = vector.shape_cast %2 : vector<1x8x1xf32> to vector<8x1xf32>
    %c0_5 = arith.constant 0 : index
    %c0_6 = arith.constant 0 : index
    %4 = vector.load %arg3[%c0_5, %c0_6] : memref<32x64xf32, #tpu.memory_space<vmem>>, vector<32x64xf32>
    %cst = arith.constant dense<0.000000e+00> : vector<8x64xf32>
    %5 = tpu.matmul %1, %4, %cst {dimension_numbers = #tpu.dot_dimension_numbers<[1], [0], [0], [1], [0, 0, 1, 1], [], []>} : vector<8x32xf32>, vector<32x64xf32>, vector<8x64xf32> -> vector<8x64xf32>
    %c0_7 = arith.constant 0 : index
    %c0_8 = arith.constant 0 : index
    %6 = vector.load %arg4[%c0_7, %c0_8] : memref<1x64xf32, #tpu.memory_space<vmem>>, vector<1x64xf32>
    %7 = vector.broadcast %6 : vector<1x64xf32> to vector<8x64xf32>
    %8 = arith.addf %5, %7 : vector<8x64xf32>
    %cst_9 = arith.constant 0.000000e+00 : f32
    %9 = vector.broadcast %cst_9 : f32 to vector<8x64xf32>
    %10 = arith.maximumf %8, %9 : vector<8x64xf32>
    %c0_10 = arith.constant 0 : index
    %c0_11 = arith.constant 0 : index
    %11 = vector.load %arg5[%c0_10, %c0_11] : memref<64x32xf32, #tpu.memory_space<vmem>>, vector<64x32xf32>
    %cst_12 = arith.constant dense<0.000000e+00> : vector<8x32xf32>
    %12 = tpu.matmul %10, %11, %cst_12 {dimension_numbers = #tpu.dot_dimension_numbers<[1], [0], [0], [1], [0, 0, 1, 1], [], []>} : vector<8x64xf32>, vector<64x32xf32>, vector<8x32xf32> -> vector<8x32xf32>
    %c0_13 = arith.constant 0 : index
    %c0_14 = arith.constant 0 : index
    %13 = vector.load %arg6[%c0_13, %c0_14] : memref<1x32xf32, #tpu.memory_space<vmem>>, vector<1x32xf32>
    %14 = vector.broadcast %13 : vector<1x32xf32> to vector<8x32xf32>
    %15 = arith.addf %12, %14 : vector<8x32xf32>
    %16 = arith.addf %15, %1 : vector<8x32xf32>
    %cst_15 = arith.constant dense<0.000000e+00> : vector<8xf32>
    %17 = vector.multi_reduction <add>, %16, %cst_15 [1] : vector<8x32xf32> to vector<8xf32>
    %18 = vector.shape_cast %17 : vector<8xf32> to vector<8x1xf32>
    %cst_16 = arith.constant 3.200000e+01 : f32
    %19 = vector.broadcast %cst_16 : f32 to vector<8x1xf32>
    %20 = arith.divf %18, %19 : vector<8x1xf32>
    %21 = vector.broadcast %20 : vector<8x1xf32> to vector<8x32xf32>
    %22 = arith.subf %16, %21 : vector<8x32xf32>
    %23 = arith.mulf %22, %22 : vector<8x32xf32>
    %cst_17 = arith.constant dense<0.000000e+00> : vector<8xf32>
    %24 = vector.multi_reduction <add>, %23, %cst_17 [1] : vector<8x32xf32> to vector<8xf32>
    %25 = vector.shape_cast %24 : vector<8xf32> to vector<8x1xf32>
    %cst_18 = arith.constant 3.200000e+01 : f32
    %26 = vector.broadcast %cst_18 : f32 to vector<8x1xf32>
    %27 = arith.divf %25, %26 : vector<8x1xf32>
    %28 = vector.broadcast %20 : vector<8x1xf32> to vector<8x32xf32>
    %29 = arith.subf %16, %28 : vector<8x32xf32>
    %cst_19 = arith.constant 9.99999974E-6 : f32
    %30 = vector.broadcast %cst_19 : f32 to vector<8x1xf32>
    %31 = arith.addf %27, %30 : vector<8x1xf32>
    %32 = math.rsqrt %31 : vector<8x1xf32>
    %33 = vector.broadcast %32 : vector<8x1xf32> to vector<8x32xf32>
    %34 = arith.mulf %29, %33 : vector<8x32xf32>
    %c0_20 = arith.constant 0 : index
    %c0_21 = arith.constant 0 : index
    %35 = vector.load %arg7[%c0_20, %c0_21] : memref<1x32xf32, #tpu.memory_space<vmem>>, vector<1x32xf32>
    %36 = vector.broadcast %35 : vector<1x32xf32> to vector<8x32xf32>
    %37 = arith.mulf %34, %36 : vector<8x32xf32>
    %c0_22 = arith.constant 0 : index
    %c0_23 = arith.constant 0 : index
    %38 = vector.load %arg8[%c0_22, %c0_23] : memref<1x32xf32, #tpu.memory_space<vmem>>, vector<1x32xf32>
    %39 = vector.broadcast %38 : vector<1x32xf32> to vector<8x32xf32>
    %40 = arith.addf %37, %39 : vector<8x32xf32>
    %41 = vector.broadcast %3 : vector<8x1xf32> to vector<8x32xf32>
    %42 = arith.mulf %40, %41 : vector<8x32xf32>
    %c0_24 = arith.constant 0 : index
    %c0_25 = arith.constant 0 : index
    %43 = vector.load %arg9[%c0_24, %c0_25] : memref<32x64xf32, #tpu.memory_space<vmem>>, vector<32x64xf32>
    %cst_26 = arith.constant dense<0.000000e+00> : vector<8x64xf32>
    %44 = tpu.matmul %42, %43, %cst_26 {dimension_numbers = #tpu.dot_dimension_numbers<[1], [0], [0], [1], [0, 0, 1, 1], [], []>} : vector<8x32xf32>, vector<32x64xf32>, vector<8x64xf32> -> vector<8x64xf32>
    %c0_27 = arith.constant 0 : index
    %c0_28 = arith.constant 0 : index
    %45 = vector.load %arg10[%c0_27, %c0_28] : memref<1x64xf32, #tpu.memory_space<vmem>>, vector<1x64xf32>
    %46 = vector.broadcast %45 : vector<1x64xf32> to vector<8x64xf32>
    %47 = arith.addf %44, %46 : vector<8x64xf32>
    %cst_29 = arith.constant 0.000000e+00 : f32
    %48 = vector.broadcast %cst_29 : f32 to vector<8x64xf32>
    %49 = arith.maximumf %47, %48 : vector<8x64xf32>
    %c0_30 = arith.constant 0 : index
    %c0_31 = arith.constant 0 : index
    %50 = vector.load %arg11[%c0_30, %c0_31] : memref<64x32xf32, #tpu.memory_space<vmem>>, vector<64x32xf32>
    %cst_32 = arith.constant dense<0.000000e+00> : vector<8x32xf32>
    %51 = tpu.matmul %49, %50, %cst_32 {dimension_numbers = #tpu.dot_dimension_numbers<[1], [0], [0], [1], [0, 0, 1, 1], [], []>} : vector<8x64xf32>, vector<64x32xf32>, vector<8x32xf32> -> vector<8x32xf32>
    %c0_33 = arith.constant 0 : index
    %c0_34 = arith.constant 0 : index
    %52 = vector.load %arg12[%c0_33, %c0_34] : memref<20x32xf32, #tpu.memory_space<vmem>>, vector<20x32xf32>
    %53 = tpu.iota {dimensions = array<i32: 0>} : vector<8x1xi32>
    %54 = vector.extract_strided_slice %52 {offsets = [19, 0], sizes = [1, 32], strides = [1, 1]} : vector<20x32xf32> to vector<1x32xf32>
    %55 = vector.shape_cast %54 : vector<1x32xf32> to vector<32xf32>
    %56 = vector.shape_cast %55 : vector<32xf32> to vector<1x32xf32>
    %57 = vector.broadcast %56 : vector<1x32xf32> to vector<8x32xf32>
    %58 = arith.mulf %51, %57 : vector<8x32xf32>
    %c1_i32 = arith.constant 1 : i32
    %59 = vector.broadcast %c1_i32 : i32 to vector<8x1xi32>
    %60 = arith.cmpi sge, %53, %59 : vector<8x1xi32>
    %c1_i32_35 = arith.constant 1 : i32
    %61 = tpu.dynamic_rotate %51 by %c1_i32_35 dim 0 : vector<8x32xf32>, i32 -> vector<8x32xf32>
    %cst_36 = arith.constant 0.000000e+00 : f32
    %62 = vector.shape_cast %60 : vector<8x1xi1> to vector<8x1xi1>
    %63 = vector.broadcast %62 : vector<8x1xi1> to vector<8x32xi1>
    %64 = vector.broadcast %cst_36 : f32 to vector<8x32xf32>
    %65 = arith.select %63, %61, %64 : vector<8x32xi1>, vector<8x32xf32>
    %66 = vector.extract_strided_slice %52 {offsets = [18, 0], sizes = [1, 32], strides = [1, 1]} : vector<20x32xf32> to vector<1x32xf32>
    %67 = vector.shape_cast %66 : vector<1x32xf32> to vector<32xf32>
    %68 = vector.shape_cast %67 : vector<32xf32> to vector<1x32xf32>
    %69 = vector.broadcast %68 : vector<1x32xf32> to vector<8x32xf32>
    %70 = arith.mulf %65, %69 : vector<8x32xf32>
    %c2_i32 = arith.constant 2 : i32
    %71 = vector.broadcast %c2_i32 : i32 to vector<8x1xi32>
    %72 = arith.cmpi sge, %53, %71 : vector<8x1xi32>
    %c2_i32_37 = arith.constant 2 : i32
    %73 = tpu.dynamic_rotate %51 by %c2_i32_37 dim 0 : vector<8x32xf32>, i32 -> vector<8x32xf32>
    %cst_38 = arith.constant 0.000000e+00 : f32
    %74 = vector.shape_cast %72 : vector<8x1xi1> to vector<8x1xi1>
    %75 = vector.broadcast %74 : vector<8x1xi1> to vector<8x32xi1>
    %76 = vector.broadcast %cst_38 : f32 to vector<8x32xf32>
    %77 = arith.select %75, %73, %76 : vector<8x32xi1>, vector<8x32xf32>
    %78 = vector.extract_strided_slice %52 {offsets = [17, 0], sizes = [1, 32], strides = [1, 1]} : vector<20x32xf32> to vector<1x32xf32>
    %79 = vector.shape_cast %78 : vector<1x32xf32> to vector<32xf32>
    %80 = vector.shape_cast %79 : vector<32xf32> to vector<1x32xf32>
    %81 = vector.broadcast %80 : vector<1x32xf32> to vector<8x32xf32>
    %82 = arith.mulf %77, %81 : vector<8x32xf32>
    %c3_i32 = arith.constant 3 : i32
    %83 = vector.broadcast %c3_i32 : i32 to vector<8x1xi32>
    %84 = arith.cmpi sge, %53, %83 : vector<8x1xi32>
    %c3_i32_39 = arith.constant 3 : i32
    %85 = tpu.dynamic_rotate %51 by %c3_i32_39 dim 0 : vector<8x32xf32>, i32 -> vector<8x32xf32>
    %cst_40 = arith.constant 0.000000e+00 : f32
    %86 = vector.shape_cast %84 : vector<8x1xi1> to vector<8x1xi1>
    %87 = vector.broadcast %86 : vector<8x1xi1> to vector<8x32xi1>
    %88 = vector.broadcast %cst_40 : f32 to vector<8x32xf32>
    %89 = arith.select %87, %85, %88 : vector<8x32xi1>, vector<8x32xf32>
    %90 = vector.extract_strided_slice %52 {offsets = [16, 0], sizes = [1, 32], strides = [1, 1]} : vector<20x32xf32> to vector<1x32xf32>
    %91 = vector.shape_cast %90 : vector<1x32xf32> to vector<32xf32>
    %92 = vector.shape_cast %91 : vector<32xf32> to vector<1x32xf32>
    %93 = vector.broadcast %92 : vector<1x32xf32> to vector<8x32xf32>
    %94 = arith.mulf %89, %93 : vector<8x32xf32>
    %c4_i32 = arith.constant 4 : i32
    %95 = vector.broadcast %c4_i32 : i32 to vector<8x1xi32>
    %96 = arith.cmpi sge, %53, %95 : vector<8x1xi32>
    %c4_i32_41 = arith.constant 4 : i32
    %97 = tpu.dynamic_rotate %51 by %c4_i32_41 dim 0 : vector<8x32xf32>, i32 -> vector<8x32xf32>
    %cst_42 = arith.constant 0.000000e+00 : f32
    %98 = vector.shape_cast %96 : vector<8x1xi1> to vector<8x1xi1>
    %99 = vector.broadcast %98 : vector<8x1xi1> to vector<8x32xi1>
    %100 = vector.broadcast %cst_42 : f32 to vector<8x32xf32>
    %101 = arith.select %99, %97, %100 : vector<8x32xi1>, vector<8x32xf32>
    %102 = vector.extract_strided_slice %52 {offsets = [15, 0], sizes = [1, 32], strides = [1, 1]} : vector<20x32xf32> to vector<1x32xf32>
    %103 = vector.shape_cast %102 : vector<1x32xf32> to vector<32xf32>
    %104 = vector.shape_cast %103 : vector<32xf32> to vector<1x32xf32>
    %105 = vector.broadcast %104 : vector<1x32xf32> to vector<8x32xf32>
    %106 = arith.mulf %101, %105 : vector<8x32xf32>
    %107 = arith.addf %58, %106 : vector<8x32xf32>
    %c5_i32 = arith.constant 5 : i32
    %108 = vector.broadcast %c5_i32 : i32 to vector<8x1xi32>
    %109 = arith.cmpi sge, %53, %108 : vector<8x1xi32>
    %c5_i32_43 = arith.constant 5 : i32
    %110 = tpu.dynamic_rotate %51 by %c5_i32_43 dim 0 : vector<8x32xf32>, i32 -> vector<8x32xf32>
    %cst_44 = arith.constant 0.000000e+00 : f32
    %111 = vector.shape_cast %109 : vector<8x1xi1> to vector<8x1xi1>
    %112 = vector.broadcast %111 : vector<8x1xi1> to vector<8x32xi1>
    %113 = vector.broadcast %cst_44 : f32 to vector<8x32xf32>
    %114 = arith.select %112, %110, %113 : vector<8x32xi1>, vector<8x32xf32>
    %115 = vector.extract_strided_slice %52 {offsets = [14, 0], sizes = [1, 32], strides = [1, 1]} : vector<20x32xf32> to vector<1x32xf32>
    %116 = vector.shape_cast %115 : vector<1x32xf32> to vector<32xf32>
    %117 = vector.shape_cast %116 : vector<32xf32> to vector<1x32xf32>
    %118 = vector.broadcast %117 : vector<1x32xf32> to vector<8x32xf32>
    %119 = arith.mulf %114, %118 : vector<8x32xf32>
    %120 = arith.addf %70, %119 : vector<8x32xf32>
    %c6_i32 = arith.constant 6 : i32
    %121 = vector.broadcast %c6_i32 : i32 to vector<8x1xi32>
    %122 = arith.cmpi sge, %53, %121 : vector<8x1xi32>
    %c6_i32_45 = arith.constant 6 : i32
    %123 = tpu.dynamic_rotate %51 by %c6_i32_45 dim 0 : vector<8x32xf32>, i32 -> vector<8x32xf32>
    %cst_46 = arith.constant 0.000000e+00 : f32
    %124 = vector.shape_cast %122 : vector<8x1xi1> to vector<8x1xi1>
    %125 = vector.broadcast %124 : vector<8x1xi1> to vector<8x32xi1>
    %126 = vector.broadcast %cst_46 : f32 to vector<8x32xf32>
    %127 = arith.select %125, %123, %126 : vector<8x32xi1>, vector<8x32xf32>
    %128 = vector.extract_strided_slice %52 {offsets = [13, 0], sizes = [1, 32], strides = [1, 1]} : vector<20x32xf32> to vector<1x32xf32>
    %129 = vector.shape_cast %128 : vector<1x32xf32> to vector<32xf32>
    %130 = vector.shape_cast %129 : vector<32xf32> to vector<1x32xf32>
    %131 = vector.broadcast %130 : vector<1x32xf32> to vector<8x32xf32>
    %132 = arith.mulf %127, %131 : vector<8x32xf32>
    %133 = arith.addf %82, %132 : vector<8x32xf32>
    %c7_i32 = arith.constant 7 : i32
    %134 = vector.broadcast %c7_i32 : i32 to vector<8x1xi32>
    %135 = arith.cmpi sge, %53, %134 : vector<8x1xi32>
    %c7_i32_47 = arith.constant 7 : i32
    %136 = tpu.dynamic_rotate %51 by %c7_i32_47 dim 0 : vector<8x32xf32>, i32 -> vector<8x32xf32>
    %cst_48 = arith.constant 0.000000e+00 : f32
    %137 = vector.shape_cast %135 : vector<8x1xi1> to vector<8x1xi1>
    %138 = vector.broadcast %137 : vector<8x1xi1> to vector<8x32xi1>
    %139 = vector.broadcast %cst_48 : f32 to vector<8x32xf32>
    %140 = arith.select %138, %136, %139 : vector<8x32xi1>, vector<8x32xf32>
    %141 = vector.extract_strided_slice %52 {offsets = [12, 0], sizes = [1, 32], strides = [1, 1]} : vector<20x32xf32> to vector<1x32xf32>
    %142 = vector.shape_cast %141 : vector<1x32xf32> to vector<32xf32>
    %143 = vector.shape_cast %142 : vector<32xf32> to vector<1x32xf32>
    %144 = vector.broadcast %143 : vector<1x32xf32> to vector<8x32xf32>
    %145 = arith.mulf %140, %144 : vector<8x32xf32>
    %146 = arith.addf %94, %145 : vector<8x32xf32>
    %147 = arith.addf %107, %120 : vector<8x32xf32>
    %148 = arith.addf %147, %133 : vector<8x32xf32>
    %149 = arith.addf %148, %146 : vector<8x32xf32>
    %150 = arith.addf %51, %149 : vector<8x32xf32>
    %151 = vector.broadcast %3 : vector<8x1xf32> to vector<8x32xf32>
    %152 = arith.mulf %150, %151 : vector<8x32xf32>
    %c0_49 = arith.constant 0 : index
    %c0_50 = arith.constant 0 : index
    %c0_51 = arith.constant 0 : index
    %153 = vector.load %arg13[%c0_49, %c0_50, %c0_51] : memref<1x8x32xf32, #tpu.memory_space<vmem>>, vector<1x8x32xf32>
    %154 = vector.shape_cast %153 : vector<1x8x32xf32> to vector<8x32xf32>
    %155 = vector.shape_cast %152 : vector<8x32xf32> to vector<1x8x32xf32>
    tpu.vector_store %arg13[%c0_49, %c0_50, %c0_51], %155 {strides = array<i32>} : memref<1x8x32xf32, #tpu.memory_space<vmem>>, vector<1x8x32xf32>,
    return
  }
  func.func @transform_0(%arg0: i32) -> (i32, i32, i32) {
    %c0_i32 = arith.constant 0 : i32
    %c0_i32_0 = arith.constant 0 : i32
    %c0_i32_1 = arith.constant 0 : i32
    return %arg0, %c0_i32, %c0_i32_0 : i32, i32, i32
  }
  func.func @transform_1(%arg0: i32) -> (i32, i32, i32) {
    %c0_i32 = arith.constant 0 : i32
    %c0_i32_0 = arith.constant 0 : i32
    %c0_i32_1 = arith.constant 0 : i32
    return %arg0, %c0_i32, %c0_i32_0 : i32, i32, i32
  }
  func.func @transform_2(%arg0: i32) -> (i32, i32) {
    %c0_i32 = arith.constant 0 : i32
    %c0_i32_0 = arith.constant 0 : i32
    %c0_i32_1 = arith.constant 0 : i32
    return %c0_i32, %c0_i32_0 : i32, i32
  }
  func.func @transform_3(%arg0: i32) -> (i32, i32) {
    %c0_i32 = arith.constant 0 : i32
    %c0_i32_0 = arith.constant 0 : i32
    %c0_i32_1 = arith.constant 0 : i32
    return %c0_i32, %c0_i32_0 : i32, i32
  }
  func.func @transform_4(%arg0: i32) -> (i32, i32) {
    %c0_i32 = arith.constant 0 : i32
    %c0_i32_0 = arith.constant 0 : i32
    %c0_i32_1 = arith.constant 0 : i32
    return %c0_i32, %c0_i32_0 : i32, i32
  }
  func.func @transform_5(%arg0: i32) -> (i32, i32) {
    %c0_i32 = arith.constant 0 : i32
    %c0_i32_0 = arith.constant 0 : i32
    %c0_i32_1 = arith.constant 0 : i32
    return %c0_i32, %c0_i32_0 : i32, i32
  }
  func.func @transform_6(%arg0: i32) -> (i32, i32) {
    %c0_i32 = arith.constant 0 : i32
    %c0_i32_0 = arith.constant 0 : i32
    %c0_i32_1 = arith.constant 0 : i32
    return %c0_i32, %c0_i32_0 : i32, i32
  }
  func.func @transform_7(%arg0: i32) -> (i32, i32) {
    %c0_i32 = arith.constant 0 : i32
    %c0_i32_0 = arith.constant 0 : i32
    %c0_i32_1 = arith.constant 0 : i32
    return %c0_i32, %c0_i32_0 : i32, i32
  }
  func.func @transform_8(%arg0: i32) -> (i32, i32) {
    %c0_i32 = arith.constant 0 : i32
    %c0_i32_0 = arith.constant 0 : i32
    %c0_i32_1 = arith.constant 0 : i32
    return %c0_i32, %c0_i32_0 : i32, i32
  }
  func.func @transform_9(%arg0: i32) -> (i32, i32) {
    %c0_i32 = arith.constant 0 : i32
    %c0_i32_0 = arith.constant 0 : i32
    %c0_i32_1 = arith.constant 0 : i32
    return %c0_i32, %c0_i32_0 : i32, i32
  }
  func.func @transform_10(%arg0: i32) -> (i32, i32) {
    %c0_i32 = arith.constant 0 : i32
    %c0_i32_0 = arith.constant 0 : i32
    %c0_i32_1 = arith.constant 0 : i32
    return %c0_i32, %c0_i32_0 : i32, i32
  }
  func.func @transform_11(%arg0: i32) -> (i32, i32) {
    %c0_i32 = arith.constant 0 : i32
    %c0_i32_0 = arith.constant 0 : i32
    %c0_i32_1 = arith.constant 0 : i32
    return %c0_i32, %c0_i32_0 : i32, i32
  }
  func.func @transform_12(%arg0: i32) -> (i32, i32, i32) {
    %c0_i32 = arith.constant 0 : i32
    %c0_i32_0 = arith.constant 0 : i32
    %c0_i32_1 = arith.constant 0 : i32
    return %arg0, %c0_i32, %c0_i32_0 : i32, i32, i32
  }
}

module attributes {stable_mosaic.version = 11 : i64} {
  func.func @_mha_kernel(%arg0: i32, %arg1: i32, %arg2: memref<1x8x32xf32, #tpu.memory_space<vmem>>, %arg3: memref<1x8x32xf32, #tpu.memory_space<vmem>>, %arg4: memref<1x8x8xi8, #tpu.memory_space<vmem>>, %arg5: memref<1x8x1xf32, #tpu.memory_space<vmem>>, %arg6: memref<1x32x8xf32, #tpu.memory_space<vmem>>, %arg7: memref<1x1x8xf32, #tpu.memory_space<vmem>>, %arg8: memref<1x32x8xf32, #tpu.memory_space<vmem>>, %arg9: memref<1x1x8xf32, #tpu.memory_space<vmem>>, %arg10: memref<1x32x8xf32, #tpu.memory_space<vmem>>, %arg11: memref<1x1x8xf32, #tpu.memory_space<vmem>>, %arg12: memref<1x8x32xf32, #tpu.memory_space<vmem>>, %arg13: memref<1x32xf32, #tpu.memory_space<vmem>>, %arg14: memref<1x32xf32, #tpu.memory_space<vmem>>, %arg15: memref<1x32xf32, #tpu.memory_space<vmem>>, %arg16: memref<1x1x8x8xf32, #tpu.memory_space<vmem>>, %arg17: memref<1x8x32xf32, #tpu.memory_space<vmem>>, %arg18: memref<8x32xf32, #tpu.memory_space<vmem>>) attributes {dimension_semantics = [#tpu.dimension_semantics<parallel>, #tpu.dimension_semantics<arbitrary>], iteration_bounds = array<i64: 2, 4>, scalar_prefetch = 0 : i64, scratch_operands = 1 : i64, tpu.core_type = #tpu.core_type<tc>, window_params = [{transform_indices = @transform_0, window_bounds = array<i64: 1, 8, 32>}, {transform_indices = @transform_1, window_bounds = array<i64: 1, 8, 32>}, {transform_indices = @transform_2, window_bounds = array<i64: 1, 8, 8>}, {transform_indices = @transform_3, window_bounds = array<i64: 1, 8, 1>}, {transform_indices = @transform_4, window_bounds = array<i64: 1, 32, 8>}, {transform_indices = @transform_5, window_bounds = array<i64: 1, 1, 8>}, {transform_indices = @transform_6, window_bounds = array<i64: 1, 32, 8>}, {transform_indices = @transform_7, window_bounds = array<i64: 1, 1, 8>}, {transform_indices = @transform_8, window_bounds = array<i64: 1, 32, 8>}, {transform_indices = @transform_9, window_bounds = array<i64: 1, 1, 8>}, {transform_indices = @transform_10, window_bounds = array<i64: 1, 8, 32>}, {pipeline_mode = #tpu.pipeline_mode<synchronous>, transform_indices = @transform_11, window_bounds = array<i64: 1, 32>}, {pipeline_mode = #tpu.pipeline_mode<synchronous>, transform_indices = @transform_12, window_bounds = array<i64: 1, 32>}, {pipeline_mode = #tpu.pipeline_mode<synchronous>, transform_indices = @transform_13, window_bounds = array<i64: 1, 32>}, {transform_indices = @transform_14, window_bounds = array<i64: 1, 1, 8, 8>}, {transform_indices = @transform_15, window_bounds = array<i64: 1, 8, 32>}]} {
    %c0 = arith.constant 0 : index
    %c0_0 = arith.constant 0 : index
    %c0_1 = arith.constant 0 : index
    %0 = vector.load %arg2[%c0, %c0_0, %c0_1] : memref<1x8x32xf32, #tpu.memory_space<vmem>>, vector<1x8x32xf32>
    %1 = vector.shape_cast %0 : vector<1x8x32xf32> to vector<8x32xf32>
    %c0_2 = arith.constant 0 : index
    %c0_3 = arith.constant 0 : index
    %c0_4 = arith.constant 0 : index
    %2 = vector.load %arg3[%c0_2, %c0_3, %c0_4] : memref<1x8x32xf32, #tpu.memory_space<vmem>>, vector<1x8x32xf32>
    %3 = vector.shape_cast %2 : vector<1x8x32xf32> to vector<8x32xf32>
    %c0_5 = arith.constant 0 : index
    %c0_6 = arith.constant 0 : index
    %c0_7 = arith.constant 0 : index
    %4 = vector.load %arg6[%c0_5, %c0_6, %c0_7] : memref<1x32x8xf32, #tpu.memory_space<vmem>>, vector<1x32x8xf32>
    %5 = vector.shape_cast %4 : vector<1x32x8xf32> to vector<32x8xf32>
    %cst = arith.constant dense<0.000000e+00> : vector<8x8xf32>
    %6 = tpu.matmul %1, %5, %cst {dimension_numbers = #tpu.dot_dimension_numbers<[1], [0], [0], [1], [0, 0, 1, 1], [], []>} : vector<8x32xf32>, vector<32x8xf32>, vector<8x8xf32> -> vector<8x8xf32>
    %c0_8 = arith.constant 0 : index
    %c0_9 = arith.constant 0 : index
    %c0_10 = arith.constant 0 : index
    %7 = vector.load %arg7[%c0_8, %c0_9, %c0_10] : memref<1x1x8xf32, #tpu.memory_space<vmem>>, vector<1x1x8xf32>
    %8 = vector.shape_cast %7 : vector<1x1x8xf32> to vector<1x8xf32>
    %9 = vector.broadcast %8 : vector<1x8xf32> to vector<8x8xf32>
    %10 = arith.addf %6, %9 : vector<8x8xf32>
    %c0_11 = arith.constant 0 : index
    %c0_12 = arith.constant 0 : index
    %c0_13 = arith.constant 0 : index
    %11 = vector.load %arg8[%c0_11, %c0_12, %c0_13] : memref<1x32x8xf32, #tpu.memory_space<vmem>>, vector<1x32x8xf32>
    %12 = vector.shape_cast %11 : vector<1x32x8xf32> to vector<32x8xf32>
    %cst_14 = arith.constant dense<0.000000e+00> : vector<8x8xf32>
    %13 = tpu.matmul %3, %12, %cst_14 {dimension_numbers = #tpu.dot_dimension_numbers<[1], [0], [0], [1], [0, 0, 1, 1], [], []>} : vector<8x32xf32>, vector<32x8xf32>, vector<8x8xf32> -> vector<8x8xf32>
    %c0_15 = arith.constant 0 : index
    %c0_16 = arith.constant 0 : index
    %c0_17 = arith.constant 0 : index
    %14 = vector.load %arg9[%c0_15, %c0_16, %c0_17] : memref<1x1x8xf32, #tpu.memory_space<vmem>>, vector<1x1x8xf32>
    %15 = vector.shape_cast %14 : vector<1x1x8xf32> to vector<1x8xf32>
    %16 = vector.broadcast %15 : vector<1x8xf32> to vector<8x8xf32>
    %17 = arith.addf %13, %16 : vector<8x8xf32>
    %c0_18 = arith.constant 0 : index
    %c0_19 = arith.constant 0 : index
    %c0_20 = arith.constant 0 : index
    %18 = vector.load %arg10[%c0_18, %c0_19, %c0_20] : memref<1x32x8xf32, #tpu.memory_space<vmem>>, vector<1x32x8xf32>
    %19 = vector.shape_cast %18 : vector<1x32x8xf32> to vector<32x8xf32>
    %cst_21 = arith.constant dense<0.000000e+00> : vector<8x8xf32>
    %20 = tpu.matmul %3, %19, %cst_21 {dimension_numbers = #tpu.dot_dimension_numbers<[1], [0], [0], [1], [0, 0, 1, 1], [], []>} : vector<8x32xf32>, vector<32x8xf32>, vector<8x8xf32> -> vector<8x8xf32>
    %c0_22 = arith.constant 0 : index
    %c0_23 = arith.constant 0 : index
    %c0_24 = arith.constant 0 : index
    %21 = vector.load %arg11[%c0_22, %c0_23, %c0_24] : memref<1x1x8xf32, #tpu.memory_space<vmem>>, vector<1x1x8xf32>
    %22 = vector.shape_cast %21 : vector<1x1x8xf32> to vector<1x8xf32>
    %23 = vector.broadcast %22 : vector<1x8xf32> to vector<8x8xf32>
    %24 = arith.addf %20, %23 : vector<8x8xf32>
    %cst_25 = arith.constant dense<0.000000e+00> : vector<8x8xf32>
    %25 = tpu.matmul %10, %17, %cst_25 {dimension_numbers = #tpu.dot_dimension_numbers<[1], [1], [0], [0], [0, 0, 1, 0], [], []>} : vector<8x8xf32>, vector<8x8xf32>, vector<8x8xf32> -> vector<8x8xf32>
    %cst_26 = arith.constant 0.353553385 : f32
    %26 = vector.broadcast %cst_26 : f32 to vector<8x8xf32>
    %27 = arith.mulf %25, %26 : vector<8x8xf32>
    %c0_27 = arith.constant 0 : index
    %c0_28 = arith.constant 0 : index
    %c0_29 = arith.constant 0 : index
    %28 = vector.load %arg4[%c0_27, %c0_28, %c0_29] : memref<1x8x8xi8, #tpu.memory_space<vmem>>, vector<1x8x8xi8>
    %29 = vector.shape_cast %28 : vector<1x8x8xi8> to vector<8x8xi8>
    %c0_i8 = arith.constant 0 : i8
    %30 = vector.broadcast %c0_i8 : i8 to vector<8x8xi8>
    %31 = arith.cmpi ne, %29, %30 : vector<8x8xi8>
    %cst_30 = arith.constant -1.000000e+30 : f32
    %32 = vector.broadcast %cst_30 : f32 to vector<8x8xf32>
    %33 = arith.select %31, %32, %27 : vector<8x8xi1>, vector<8x8xf32>
    %cst_31 = arith.constant dense<0xFF800000> : vector<8xf32>
    %34 = vector.multi_reduction <maximumf>, %33, %cst_31 [1] : vector<8x8xf32> to vector<8xf32>
    %35 = vector.shape_cast %34 : vector<8xf32> to vector<8x1xf32>
    %36 = vector.broadcast %35 : vector<8x1xf32> to vector<8x8xf32>
    %37 = arith.subf %33, %36 : vector<8x8xf32>
    %38 = math.exp %37 : vector<8x8xf32>
    %cst_32 = arith.constant dense<0.000000e+00> : vector<8xf32>
    %39 = vector.multi_reduction <add>, %38, %cst_32 [1] : vector<8x8xf32> to vector<8xf32>
    %40 = vector.shape_cast %39 : vector<8xf32> to vector<8x1xf32>
    %41 = vector.broadcast %40 : vector<8x1xf32> to vector<8x8xf32>
    %42 = arith.divf %38, %41 : vector<8x8xf32>
    %c0_33 = arith.constant 0 : index
    %c0_34 = arith.constant 0 : index
    %c0_35 = arith.constant 0 : index
    %c0_36 = arith.constant 0 : index
    %43 = vector.load %arg16[%c0_33, %c0_34, %c0_35, %c0_36] : memref<1x1x8x8xf32, #tpu.memory_space<vmem>>, vector<1x1x8x8xf32>
    %44 = vector.shape_cast %43 : vector<1x1x8x8xf32> to vector<8x8xf32>
    %45 = vector.shape_cast %42 : vector<8x8xf32> to vector<1x1x8x8xf32>
    tpu.vector_store %arg16[%c0_33, %c0_34, %c0_35, %c0_36], %45 {strides = array<i32>} : memref<1x1x8x8xf32, #tpu.memory_space<vmem>>, vector<1x1x8x8xf32>,
    %cst_37 = arith.constant dense<0.000000e+00> : vector<8x8xf32>
    %46 = tpu.matmul %42, %24, %cst_37 {dimension_numbers = #tpu.dot_dimension_numbers<[1], [0], [0], [1], [0, 0, 1, 1], [], []>} : vector<8x8xf32>, vector<8x8xf32>, vector<8x8xf32> -> vector<8x8xf32>
    %c0_38 = arith.constant 0 : index
    %c0_39 = arith.constant 0 : index
    %c0_40 = arith.constant 0 : index
    %47 = vector.load %arg12[%c0_38, %c0_39, %c0_40] : memref<1x8x32xf32, #tpu.memory_space<vmem>>, vector<1x8x32xf32>
    %48 = vector.shape_cast %47 : vector<1x8x32xf32> to vector<8x32xf32>
    %cst_41 = arith.constant dense<0.000000e+00> : vector<8x32xf32>
    %49 = tpu.matmul %46, %48, %cst_41 {dimension_numbers = #tpu.dot_dimension_numbers<[1], [0], [0], [1], [0, 0, 1, 1], [], []>} : vector<8x8xf32>, vector<8x32xf32>, vector<8x32xf32> -> vector<8x32xf32>
    %c0_i32 = arith.constant 0 : i32
    %50 = arith.cmpi eq, %arg1, %c0_i32 : i32
    %51 = arith.extui %50 : i1 to i32
    %c0_i32_42 = arith.constant 0 : i32
    %52 = arith.cmpi ne, %51, %c0_i32_42 : i32
    scf.if %52 {
      %c0_46 = arith.constant 0 : index
      %c0_47 = arith.constant 0 : index
      %59 = vector.load %arg18[%c0_46, %c0_47] : memref<8x32xf32, #tpu.memory_space<vmem>>, vector<8x32xf32>
      tpu.vector_store %arg18[%c0_46, %c0_47], %49 {strides = array<i32>} : memref<8x32xf32, #tpu.memory_space<vmem>>, vector<8x32xf32>,
    } else {
    }
    %c0_i32_43 = arith.constant 0 : i32
    %53 = arith.cmpi sgt, %arg1, %c0_i32_43 : i32
    %54 = arith.extui %53 : i1 to i32
    %c0_i32_44 = arith.constant 0 : i32
    %55 = arith.cmpi ne, %54, %c0_i32_44 : i32
    scf.if %55 {
      %c0_46 = arith.constant 0 : index
      %c0_47 = arith.constant 0 : index
      %59 = vector.load %arg18[%c0_46, %c0_47] : memref<8x32xf32, #tpu.memory_space<vmem>>, vector<8x32xf32>
      %60 = arith.addf %59, %49 : vector<8x32xf32>
      %c0_48 = arith.constant 0 : index
      %c0_49 = arith.constant 0 : index
      %61 = vector.load %arg18[%c0_48, %c0_49] : memref<8x32xf32, #tpu.memory_space<vmem>>, vector<8x32xf32>
      tpu.vector_store %arg18[%c0_48, %c0_49], %60 {strides = array<i32>} : memref<8x32xf32, #tpu.memory_space<vmem>>, vector<8x32xf32>,
    } else {
    }
    %c3_i32 = arith.constant 3 : i32
    %56 = arith.cmpi eq, %arg1, %c3_i32 : i32
    %57 = arith.extui %56 : i1 to i32
    %c0_i32_45 = arith.constant 0 : i32
    %58 = arith.cmpi ne, %57, %c0_i32_45 : i32
    scf.if %58 {
      %c0_46 = arith.constant 0 : index
      %c0_47 = arith.constant 0 : index
      %59 = vector.load %arg18[%c0_46, %c0_47] : memref<8x32xf32, #tpu.memory_space<vmem>>, vector<8x32xf32>
      %c0_48 = arith.constant 0 : index
      %c0_49 = arith.constant 0 : index
      %60 = vector.load %arg13[%c0_48, %c0_49] : memref<1x32xf32, #tpu.memory_space<vmem>>, vector<1x32xf32>
      %61 = vector.broadcast %60 : vector<1x32xf32> to vector<8x32xf32>
      %62 = arith.addf %59, %61 : vector<8x32xf32>
      %63 = arith.addf %62, %1 : vector<8x32xf32>
      %cst_50 = arith.constant dense<0.000000e+00> : vector<8xf32>
      %64 = vector.multi_reduction <add>, %63, %cst_50 [1] : vector<8x32xf32> to vector<8xf32>
      %65 = vector.shape_cast %64 : vector<8xf32> to vector<8x1xf32>
      %cst_51 = arith.constant 3.200000e+01 : f32
      %66 = vector.broadcast %cst_51 : f32 to vector<8x1xf32>
      %67 = arith.divf %65, %66 : vector<8x1xf32>
      %68 = vector.broadcast %67 : vector<8x1xf32> to vector<8x32xf32>
      %69 = arith.subf %63, %68 : vector<8x32xf32>
      %70 = arith.mulf %69, %69 : vector<8x32xf32>
      %cst_52 = arith.constant dense<0.000000e+00> : vector<8xf32>
      %71 = vector.multi_reduction <add>, %70, %cst_52 [1] : vector<8x32xf32> to vector<8xf32>
      %72 = vector.shape_cast %71 : vector<8xf32> to vector<8x1xf32>
      %cst_53 = arith.constant 3.200000e+01 : f32
      %73 = vector.broadcast %cst_53 : f32 to vector<8x1xf32>
      %74 = arith.divf %72, %73 : vector<8x1xf32>
      %75 = vector.broadcast %67 : vector<8x1xf32> to vector<8x32xf32>
      %76 = arith.subf %63, %75 : vector<8x32xf32>
      %cst_54 = arith.constant 9.99999974E-6 : f32
      %77 = vector.broadcast %cst_54 : f32 to vector<8x1xf32>
      %78 = arith.addf %74, %77 : vector<8x1xf32>
      %79 = math.rsqrt %78 : vector<8x1xf32>
      %80 = vector.broadcast %79 : vector<8x1xf32> to vector<8x32xf32>
      %81 = arith.mulf %76, %80 : vector<8x32xf32>
      %c0_55 = arith.constant 0 : index
      %c0_56 = arith.constant 0 : index
      %82 = vector.load %arg14[%c0_55, %c0_56] : memref<1x32xf32, #tpu.memory_space<vmem>>, vector<1x32xf32>
      %83 = vector.broadcast %82 : vector<1x32xf32> to vector<8x32xf32>
      %84 = arith.mulf %81, %83 : vector<8x32xf32>
      %c0_57 = arith.constant 0 : index
      %c0_58 = arith.constant 0 : index
      %85 = vector.load %arg15[%c0_57, %c0_58] : memref<1x32xf32, #tpu.memory_space<vmem>>, vector<1x32xf32>
      %86 = vector.broadcast %85 : vector<1x32xf32> to vector<8x32xf32>
      %87 = arith.addf %84, %86 : vector<8x32xf32>
      %c0_59 = arith.constant 0 : index
      %c0_60 = arith.constant 0 : index
      %c0_61 = arith.constant 0 : index
      %88 = vector.load %arg5[%c0_59, %c0_60, %c0_61] : memref<1x8x1xf32, #tpu.memory_space<vmem>>, vector<1x8x1xf32>
      %89 = vector.shape_cast %88 : vector<1x8x1xf32> to vector<8x1xf32>
      %90 = vector.broadcast %89 : vector<8x1xf32> to vector<8x32xf32>
      %91 = arith.mulf %87, %90 : vector<8x32xf32>
      %c0_62 = arith.constant 0 : index
      %c0_63 = arith.constant 0 : index
      %c0_64 = arith.constant 0 : index
      %92 = vector.load %arg17[%c0_62, %c0_63, %c0_64] : memref<1x8x32xf32, #tpu.memory_space<vmem>>, vector<1x8x32xf32>
      %93 = vector.shape_cast %92 : vector<1x8x32xf32> to vector<8x32xf32>
      %94 = vector.shape_cast %91 : vector<8x32xf32> to vector<1x8x32xf32>
      tpu.vector_store %arg17[%c0_62, %c0_63, %c0_64], %94 {strides = array<i32>} : memref<1x8x32xf32, #tpu.memory_space<vmem>>, vector<1x8x32xf32>,
    } else {
    }
    return
  }
  func.func @transform_0(%arg0: i32, %arg1: i32) -> (i32, i32, i32) {
    %c0_i32 = arith.constant 0 : i32
    %c0_i32_0 = arith.constant 0 : i32
    %c0_i32_1 = arith.constant 0 : i32
    return %arg0, %c0_i32, %c0_i32_0 : i32, i32, i32
  }
  func.func @transform_1(%arg0: i32, %arg1: i32) -> (i32, i32, i32) {
    %c0_i32 = arith.constant 0 : i32
    %c0_i32_0 = arith.constant 0 : i32
    %c0_i32_1 = arith.constant 0 : i32
    return %arg0, %c0_i32, %c0_i32_0 : i32, i32, i32
  }
  func.func @transform_2(%arg0: i32, %arg1: i32) -> (i32, i32, i32) {
    %c0_i32 = arith.constant 0 : i32
    %c0_i32_0 = arith.constant 0 : i32
    %c0_i32_1 = arith.constant 0 : i32
    return %arg0, %c0_i32, %c0_i32_0 : i32, i32, i32
  }
  func.func @transform_3(%arg0: i32, %arg1: i32) -> (i32, i32, i32) {
    %c0_i32 = arith.constant 0 : i32
    %c0_i32_0 = arith.constant 0 : i32
    %c0_i32_1 = arith.constant 0 : i32
    return %arg0, %c0_i32, %c0_i32_0 : i32, i32, i32
  }
  func.func @transform_4(%arg0: i32, %arg1: i32) -> (i32, i32, i32) {
    %c0_i32 = arith.constant 0 : i32
    %c0_i32_0 = arith.constant 0 : i32
    %c0_i32_1 = arith.constant 0 : i32
    return %arg1, %c0_i32, %c0_i32_0 : i32, i32, i32
  }
  func.func @transform_5(%arg0: i32, %arg1: i32) -> (i32, i32, i32) {
    %c0_i32 = arith.constant 0 : i32
    %c0_i32_0 = arith.constant 0 : i32
    %c0_i32_1 = arith.constant 0 : i32
    return %arg1, %c0_i32, %c0_i32_0 : i32, i32, i32
  }
  func.func @transform_6(%arg0: i32, %arg1: i32) -> (i32, i32, i32) {
    %c0_i32 = arith.constant 0 : i32
    %c0_i32_0 = arith.constant 0 : i32
    %c0_i32_1 = arith.constant 0 : i32
    return %arg1, %c0_i32, %c0_i32_0 : i32, i32, i32
  }
  func.func @transform_7(%arg0: i32, %arg1: i32) -> (i32, i32, i32) {
    %c0_i32 = arith.constant 0 : i32
    %c0_i32_0 = arith.constant 0 : i32
    %c0_i32_1 = arith.constant 0 : i32
    return %arg1, %c0_i32, %c0_i32_0 : i32, i32, i32
  }
  func.func @transform_8(%arg0: i32, %arg1: i32) -> (i32, i32, i32) {
    %c0_i32 = arith.constant 0 : i32
    %c0_i32_0 = arith.constant 0 : i32
    %c0_i32_1 = arith.constant 0 : i32
    return %arg1, %c0_i32, %c0_i32_0 : i32, i32, i32
  }
  func.func @transform_9(%arg0: i32, %arg1: i32) -> (i32, i32, i32) {
    %c0_i32 = arith.constant 0 : i32
    %c0_i32_0 = arith.constant 0 : i32
    %c0_i32_1 = arith.constant 0 : i32
    return %arg1, %c0_i32, %c0_i32_0 : i32, i32, i32
  }
  func.func @transform_10(%arg0: i32, %arg1: i32) -> (i32, i32, i32) {
    %c0_i32 = arith.constant 0 : i32
    %c0_i32_0 = arith.constant 0 : i32
    %c0_i32_1 = arith.constant 0 : i32
    return %arg1, %c0_i32, %c0_i32_0 : i32, i32, i32
  }
  func.func @transform_11(%arg0: i32, %arg1: i32) -> (i32, i32) {
    %c0_i32 = arith.constant 0 : i32
    %c0_i32_0 = arith.constant 0 : i32
    %c0_i32_1 = arith.constant 0 : i32
    return %c0_i32, %c0_i32_0 : i32, i32
  }
  func.func @transform_12(%arg0: i32, %arg1: i32) -> (i32, i32) {
    %c0_i32 = arith.constant 0 : i32
    %c0_i32_0 = arith.constant 0 : i32
    %c0_i32_1 = arith.constant 0 : i32
    return %c0_i32, %c0_i32_0 : i32, i32
  }
  func.func @transform_13(%arg0: i32, %arg1: i32) -> (i32, i32) {
    %c0_i32 = arith.constant 0 : i32
    %c0_i32_0 = arith.constant 0 : i32
    %c0_i32_1 = arith.constant 0 : i32
    return %c0_i32, %c0_i32_0 : i32, i32
  }
  func.func @transform_14(%arg0: i32, %arg1: i32) -> (i32, i32, i32, i32) {
    %c0_i32 = arith.constant 0 : i32
    %c0_i32_0 = arith.constant 0 : i32
    %c0_i32_1 = arith.constant 0 : i32
    return %arg1, %arg0, %c0_i32, %c0_i32_0 : i32, i32, i32, i32
  }
  func.func @transform_15(%arg0: i32, %arg1: i32) -> (i32, i32, i32) {
    %c0_i32 = arith.constant 0 : i32
    %c0_i32_0 = arith.constant 0 : i32
    %c0_i32_1 = arith.constant 0 : i32
    return %arg0, %c0_i32, %c0_i32_0 : i32, i32, i32
  }
}

</mosaic_0001>

<llo_original>
// kernel: decoder_layer1_forward.2
$region0: #{decoder_layer1_forward.2}
  #allocation0 [shape = 'u32[]', space=smem, size = 0x4, offset = 0x4, fixed_abs, tag = 'smem constant byte address 0x4 - core index']
  #allocation1 [shape = 'u32[144,128]{1,0:T(1,128)}', space=vmem, size = 0x12000, scoped, tag = 'internal scratch']
  %s0 = inlined_call_operand.vmem [shape: f32[2,8,32], index: 0, kind: input, shape index: {}]
  %s1 = inlined_call_operand.vmem [shape: f32[2,8,1], index: 1, kind: input, shape index: {}]
  %s2 = inlined_call_operand.vmem [shape: f32[32,64], index: 2, kind: input, shape index: {}]
  %s3 = inlined_call_operand.vmem [shape: f32[1,64], index: 3, kind: input, shape index: {}]
  %s4 = inlined_call_operand.vmem [shape: f32[64,32], index: 4, kind: input, shape index: {}]
  %s5 = inlined_call_operand.vmem [shape: f32[1,32], index: 5, kind: input, shape index: {}]
  %s6 = inlined_call_operand.vmem [shape: f32[1,32], index: 6, kind: input, shape index: {}]
  %s7 = inlined_call_operand.vmem [shape: f32[1,32], index: 7, kind: input, shape index: {}]
  %s8 = inlined_call_operand.vmem [shape: f32[32,64], index: 8, kind: input, shape index: {}]
  %s9 = inlined_call_operand.vmem [shape: f32[1,64], index: 9, kind: input, shape index: {}]
  %s10 = inlined_call_operand.vmem [shape: f32[64,32], index: 10, kind: input, shape index: {}]
  %s11 = inlined_call_operand.vmem [shape: f32[20,32], index: 11, kind: input, shape index: {}]
  %s12 = inlined_call_operand.vmem [shape: f32[2,8,32], index: 12, kind: output, shape index: {}]
  %s13 = sld [smem:[#allocation0]]
  $region81: #{decoder_layer1_forward.2} parent=0
    _
  %s15 = ssub.s32 1, %s13
  %s16 = scalar_select 0, %s15, %s13
  loop: start=0, step=1, limit=4
  $region2: #{decoder_layer1_forward.2} parent=0 // loop_pre_header
    _
  $region3: #{decoder_layer1_forward.2} parent=0 // loop_header
    %s18 = sphi 0, %s22
    %p19 = scmp.ge.s32.totalorder %s18, 4
    %s28 = sphi 0, %s30
    %s31 = sphi 0, %s28
    %s32 = sphi 0, %s31
    %s48 = sphi 0, %s32
    %s54 = sphi 0, %s56
    %s57 = sphi 0, %s54
    %s58 = sphi 0, %s57
    %s74 = sphi 0, %s58
    %s78 = sphi 0, %s78
    %s80 = sphi 0, %s78
    %s81 = sphi 0, %s80
    %s95 = sphi 0, %s81
    %s99 = sphi 0, %s99
    %s101 = sphi 0, %s99
    %s102 = sphi 0, %s101
    %s116 = sphi 0, %s102
    %s120 = sphi 0, %s120
    %s122 = sphi 0, %s120
    %s123 = sphi 0, %s122
    %s137 = sphi 0, %s123
    %s141 = sphi 0, %s141
    %s143 = sphi 0, %s141
    %s144 = sphi 0, %s143
    %s158 = sphi 0, %s144
    %s162 = sphi 0, %s162
    %s164 = sphi 0, %s162
    %s165 = sphi 0, %s164
    %s179 = sphi 0, %s165
    %s183 = sphi 0, %s183
    %s185 = sphi 0, %s183
    %s186 = sphi 0, %s185
    %s200 = sphi 0, %s186
    %s204 = sphi 0, %s204
    %s206 = sphi 0, %s204
    %s207 = sphi 0, %s206
    %s221 = sphi 0, %s207
    %s225 = sphi 0, %s225
    %s227 = sphi 0, %s225
    %s228 = sphi 0, %s227
    %s242 = sphi 0, %s228
    %s246 = sphi 0, %s246
    %s248 = sphi 0, %s246
    %s249 = sphi 0, %s248
    %s263 = sphi 0, %s249
    %s267 = sphi 0, %s267
    %s269 = sphi 0, %s267
    %s270 = sphi 0, %s269
    %s284 = sphi 0, %s270
    %s290 = sphi 0, %s292
    %s293 = sphi 0, %s290
    %s294 = sphi 0, %s293
    %s310 = sphi 0, %s294
  $region4: #{decoder_layer1_forward.2} parent=0 // loop_header_branch
    %21 = sbr.rel (%p19) target = $region8
  $region5: #{decoder_layer1_forward.2} parent=0 // loop_body
    %s23 = ssub.s32 %s18, 1
    %s24 = ssub.s32 %s18, 2
    %s25 = sadd.s32 %s18, 1
    %s26 = ssub.s32 %s18, %s25
    %p27 = scmp.eq.s32.totalorder %s26, 0
    %s29 = sadd.s32 %s28, 1
    %s30 = scalar_select %p27, %s28, %s29
    %p33 = pneg %p27
    %p34 = scmp.eq.s32.totalorder %s18, 1
    %p35 = por %p33, %p34
    %p36 = scmp.ne.s32.totalorder %s28, %s31
    %p37 = scmp.eq.s32.totalorder %s18, 0
    %p38 = por %p36, %p37
    %p39 = scmp.ne.s32.totalorder %s28, %s31
    %p40 = scmp.eq.s32.totalorder %s23, 1
    %p41 = por %p39, %p40
    %p42 = scmp.ne.s32.totalorder %s31, %s32
    %p43 = scmp.eq.s32.totalorder %s23, 0
    %p44 = por %p42, %p43
    %p45 = scmp.ne.s32.totalorder %s31, %s32
    %p46 = scmp.eq.s32.totalorder %s24, 1
    %p47 = por %p45, %p46
    %p49 = scmp.ne.s32.totalorder %s32, %s48
    %p50 = scmp.eq.s32.totalorder %s24, 0
    %p51 = por %p49, %p50
    %s52 = ssub.s32 %s18, %s25
    %p53 = scmp.eq.s32.totalorder %s52, 0
    %s55 = sadd.s32 %s54, 1
    %s56 = scalar_select %p53, %s54, %s55
    %p59 = pneg %p53
    %p60 = scmp.eq.s32.totalorder %s18, 1
    %p61 = por %p59, %p60
    %p62 = scmp.ne.s32.totalorder %s54, %s57
    %p63 = scmp.eq.s32.totalorder %s18, 0
    %p64 = por %p62, %p63
    %p65 = scmp.ne.s32.totalorder %s54, %s57
    %p66 = scmp.eq.s32.totalorder %s23, 1
    %p67 = por %p65, %p66
    %p68 = scmp.ne.s32.totalorder %s57, %s58
    %p69 = scmp.eq.s32.totalorder %s23, 0
    %p70 = por %p68, %p69
    %p71 = scmp.ne.s32.totalorder %s57, %s58
    %p72 = scmp.eq.s32.totalorder %s24, 1
    %p73 = por %p71, %p72
    %p75 = scmp.ne.s32.totalorder %s58, %s74
    %p76 = scmp.eq.s32.totalorder %s24, 0
    %p77 = por %p75, %p76
    %s79 = sadd.s32 %s78, 1
    %p82 = scmp.eq.s32.totalorder %s18, 1
    %p83 = scmp.ne.s32.totalorder %s78, %s80
    %p84 = scmp.eq.s32.totalorder %s18, 0
    %p85 = por %p83, %p84
    %p86 = scmp.ne.s32.totalorder %s78, %s80
    %p87 = scmp.eq.s32.totalorder %s23, 1
    %p88 = por %p86, %p87
    %p89 = scmp.ne.s32.totalorder %s80, %s81
    %p90 = scmp.eq.s32.totalorder %s23, 0
    %p91 = por %p89, %p90
    %p92 = scmp.ne.s32.totalorder %s80, %s81
    %p93 = scmp.eq.s32.totalorder %s24, 1
    %p94 = por %p92, %p93
    %p96 = scmp.ne.s32.totalorder %s81, %s95
    %p97 = scmp.eq.s32.totalorder %s24, 0
    %p98 = por %p96, %p97
    %s100 = sadd.s32 %s99, 1
    %p103 = scmp.eq.s32.totalorder %s18, 1
    %p104 = scmp.ne.s32.totalorder %s99, %s101
    %p105 = scmp.eq.s32.totalorder %s18, 0
    %p106 = por %p104, %p105
    %p107 = scmp.ne.s32.totalorder %s99, %s101
    %p108 = scmp.eq.s32.totalorder %s23, 1
    %p109 = por %p107, %p108
    %p110 = scmp.ne.s32.totalorder %s101, %s102
    %p111 = scmp.eq.s32.totalorder %s23, 0
    %p112 = por %p110, %p111
    %p113 = scmp.ne.s32.totalorder %s101, %s102
    %p114 = scmp.eq.s32.totalorder %s24, 1
    %p115 = por %p113, %p114
    %p117 = scmp.ne.s32.totalorder %s102, %s116
    %p118 = scmp.eq.s32.totalorder %s24, 0
    %p119 = por %p117, %p118
    %s121 = sadd.s32 %s120, 1
    %p124 = scmp.eq.s32.totalorder %s18, 1
    %p125 = scmp.ne.s32.totalorder %s120, %s122
    %p126 = scmp.eq.s32.totalorder %s18, 0
    %p127 = por %p125, %p126
    %p128 = scmp.ne.s32.totalorder %s120, %s122
    %p129 = scmp.eq.s32.totalorder %s23, 1
    %p130 = por %p128, %p129
    %p131 = scmp.ne.s32.totalorder %s122, %s123
    %p132 = scmp.eq.s32.totalorder %s23, 0
    %p133 = por %p131, %p132
    %p134 = scmp.ne.s32.totalorder %s122, %s123
    %p135 = scmp.eq.s32.totalorder %s24, 1
    %p136 = por %p134, %p135
    %p138 = scmp.ne.s32.totalorder %s123, %s137
    %p139 = scmp.eq.s32.totalorder %s24, 0
    %p140 = por %p138, %p139
    %s142 = sadd.s32 %s141, 1
    %p145 = scmp.eq.s32.totalorder %s18, 1
    %p146 = scmp.ne.s32.totalorder %s141, %s143
    %p147 = scmp.eq.s32.totalorder %s18, 0
    %p148 = por %p146, %p147
    %p149 = scmp.ne.s32.totalorder %s141, %s143
    %p150 = scmp.eq.s32.totalorder %s23, 1
    %p151 = por %p149, %p150
    %p152 = scmp.ne.s32.totalorder %s143, %s144
    %p153 = scmp.eq.s32.totalorder %s23, 0
    %p154 = por %p152, %p153
    %p155 = scmp.ne.s32.totalorder %s143, %s144
    %p156 = scmp.eq.s32.totalorder %s24, 1
    %p157 = por %p155, %p156
    %p159 = scmp.ne.s32.totalorder %s144, %s158
    %p160 = scmp.eq.s32.totalorder %s24, 0
    %p161 = por %p159, %p160
    %s163 = sadd.s32 %s162, 1
    %p166 = scmp.eq.s32.totalorder %s18, 1
    %p167 = scmp.ne.s32.totalorder %s162, %s164
    %p168 = scmp.eq.s32.totalorder %s18, 0
    %p169 = por %p167, %p168
    %p170 = scmp.ne.s32.totalorder %s162, %s164
    %p171 = scmp.eq.s32.totalorder %s23, 1
    %p172 = por %p170, %p171
    %p173 = scmp.ne.s32.totalorder %s164, %s165
    %p174 = scmp.eq.s32.totalorder %s23, 0
    %p175 = por %p173, %p174
    %p176 = scmp.ne.s32.totalorder %s164, %s165
    %p177 = scmp.eq.s32.totalorder %s24, 1
    %p178 = por %p176, %p177
    %p180 = scmp.ne.s32.totalorder %s165, %s179
    %p181 = scmp.eq.s32.totalorder %s24, 0
    %p182 = por %p180, %p181
    %s184 = sadd.s32 %s183, 1
    %p187 = scmp.eq.s32.totalorder %s18, 1
    %p188 = scmp.ne.s32.totalorder %s183, %s185
    %p189 = scmp.eq.s32.totalorder %s18, 0
    %p190 = por %p188, %p189
    %p191 = scmp.ne.s32.totalorder %s183, %s185
    %p192 = scmp.eq.s32.totalorder %s23, 1
    %p193 = por %p191, %p192
    %p194 = scmp.ne.s32.totalorder %s185, %s186
    %p195 = scmp.eq.s32.totalorder %s23, 0
    %p196 = por %p194, %p195
    %p197 = scmp.ne.s32.totalorder %s185, %s186
    %p198 = scmp.eq.s32.totalorder %s24, 1
    %p199 = por %p197, %p198
    %p201 = scmp.ne.s32.totalorder %s186, %s200
    %p202 = scmp.eq.s32.totalorder %s24, 0
    %p203 = por %p201, %p202
    %s205 = sadd.s32 %s204, 1
    %p208 = scmp.eq.s32.totalorder %s18, 1
    %p209 = scmp.ne.s32.totalorder %s204, %s206
    %p210 = scmp.eq.s32.totalorder %s18, 0
    %p211 = por %p209, %p210
    %p212 = scmp.ne.s32.totalorder %s204, %s206
    %p213 = scmp.eq.s32.totalorder %s23, 1
    %p214 = por %p212, %p213
    %p215 = scmp.ne.s32.totalorder %s206, %s207
    %p216 = scmp.eq.s32.totalorder %s23, 0
    %p217 = por %p215, %p216
    %p218 = scmp.ne.s32.totalorder %s206, %s207
    %p219 = scmp.eq.s32.totalorder %s24, 1
    %p220 = por %p218, %p219
    %p222 = scmp.ne.s32.totalorder %s207, %s221
    %p223 = scmp.eq.s32.totalorder %s24, 0
    %p224 = por %p222, %p223
    %s226 = sadd.s32 %s225, 1
    %p229 = scmp.eq.s32.totalorder %s18, 1
    %p230 = scmp.ne.s32.totalorder %s225, %s227
    %p231 = scmp.eq.s32.totalorder %s18, 0
    %p232 = por %p230, %p231
    %p233 = scmp.ne.s32.totalorder %s225, %s227
    %p234 = scmp.eq.s32.totalorder %s23, 1
    %p235 = por %p233, %p234
    %p236 = scmp.ne.s32.totalorder %s227, %s228
    %p237 = scmp.eq.s32.totalorder %s23, 0
    %p238 = por %p236, %p237
    %p239 = scmp.ne.s32.totalorder %s227, %s228
    %p240 = scmp.eq.s32.totalorder %s24, 1
    %p241 = por %p239, %p240
    %p243 = scmp.ne.s32.totalorder %s228, %s242
    %p244 = scmp.eq.s32.totalorder %s24, 0
    %p245 = por %p243, %p244
    %s247 = sadd.s32 %s246, 1
    %p250 = scmp.eq.s32.totalorder %s18, 1
    %p251 = scmp.ne.s32.totalorder %s246, %s248
    %p252 = scmp.eq.s32.totalorder %s18, 0
    %p253 = por %p251, %p252
    %p254 = scmp.ne.s32.totalorder %s246, %s248
    %p255 = scmp.eq.s32.totalorder %s23, 1
    %p256 = por %p254, %p255
    %p257 = scmp.ne.s32.totalorder %s248, %s249
    %p258 = scmp.eq.s32.totalorder %s23, 0
    %p259 = por %p257, %p258
    %p260 = scmp.ne.s32.totalorder %s248, %s249
    %p261 = scmp.eq.s32.totalorder %s24, 1
    %p262 = por %p260, %p261
    %p264 = scmp.ne.s32.totalorder %s249, %s263
    %p265 = scmp.eq.s32.totalorder %s24, 0
    %p266 = por %p264, %p265
    %s268 = sadd.s32 %s267, 1
    %p271 = scmp.eq.s32.totalorder %s18, 1
    %p272 = scmp.ne.s32.totalorder %s267, %s269
    %p273 = scmp.eq.s32.totalorder %s18, 0
    %p274 = por %p272, %p273
    %p275 = scmp.ne.s32.totalorder %s267, %s269
    %p276 = scmp.eq.s32.totalorder %s23, 1
    %p277 = por %p275, %p276
    %p278 = scmp.ne.s32.totalorder %s269, %s270
    %p279 = scmp.eq.s32.totalorder %s23, 0
    %p280 = por %p278, %p279
    %p281 = scmp.ne.s32.totalorder %s269, %s270
    %p282 = scmp.eq.s32.totalorder %s24, 1
    %p283 = por %p281, %p282
    %p285 = scmp.ne.s32.totalorder %s270, %s284
    %p286 = scmp.eq.s32.totalorder %s24, 0
    %p287 = por %p285, %p286
    %s288 = ssub.s32 %s18, %s25
    %p289 = scmp.eq.s32.totalorder %s288, 0
    %s291 = sadd.s32 %s290, 1
    %s292 = scalar_select %p289, %s290, %s291
    %p295 = pneg %p289
    %p296 = scmp.eq.s32.totalorder %s18, 1
    %p297 = por %p295, %p296
    %p298 = scmp.ne.s32.totalorder %s290, %s293
    %p299 = scmp.eq.s32.totalorder %s18, 0
    %p300 = por %p298, %p299
    %p301 = scmp.ne.s32.totalorder %s290, %s293
    %p302 = scmp.eq.s32.totalorder %s23, 1
    %p303 = por %p301, %p302
    %p304 = scmp.ne.s32.totalorder %s293, %s294
    %p305 = scmp.eq.s32.totalorder %s23, 0
    %p306 = por %p304, %p305
    %p307 = scmp.ne.s32.totalorder %s293, %s294
    %p308 = scmp.eq.s32.totalorder %s24, 1
    %p309 = por %p307, %p308
    %p311 = scmp.ne.s32.totalorder %s294, %s310
    %p312 = scmp.eq.s32.totalorder %s24, 0
    %p313 = por %p311, %p312
    %p314 = scmp.le.s32.totalorder 1, %s18
    %p315 = scmp.lt.s32.totalorder %s18, 3
    %p316 = pnand %p314, %p315
    %p317 = pneg %p316
    // Predicated region
    $region9: #{decoder_layer1_forward.2} parent=5 // pred_check
      _
    $region10: #{decoder_layer1_forward.2} parent=5 // pred_check_branch
      %319 = sbr.rel (%p316) target = $region12
    $region11: #{decoder_layer1_forward.2} parent=5 // pred_region
      %s320 = ssub.s32 %s18, 1
      // Predicated region
      $region13: #{decoder_layer1_forward.2} parent=11 // pred_check
        %p321 = pneg %p91
      $region14: #{decoder_layer1_forward.2} parent=11 // pred_check_branch
        %323 = sbr.rel (%p321) target = $region16
      $region15: #{decoder_layer1_forward.2} parent=11 // pred_region
        _
      $region16: #{decoder_layer1_forward.2} parent=11 // pred_fallthru
        _
      // Predicated region
      $region17: #{decoder_layer1_forward.2} parent=11 // pred_check
        %p324 = pneg %p112
      $region18: #{decoder_layer1_forward.2} parent=11 // pred_check_branch
        %326 = sbr.rel (%p324) target = $region20
      $region19: #{decoder_layer1_forward.2} parent=11 // pred_region
        _
      $region20: #{decoder_layer1_forward.2} parent=11 // pred_fallthru
        _
      // Predicated region
      $region21: #{decoder_layer1_forward.2} parent=11 // pred_check
        %p327 = pneg %p133
      $region22: #{decoder_layer1_forward.2} parent=11 // pred_check_branch
        %329 = sbr.rel (%p327) target = $region24
      $region23: #{decoder_layer1_forward.2} parent=11 // pred_region
        _
      $region24: #{decoder_layer1_forward.2} parent=11 // pred_fallthru
        _
      // Predicated region
      $region25: #{decoder_layer1_forward.2} parent=11 // pred_check
        %p330 = pneg %p154
      $region26: #{decoder_layer1_forward.2} parent=11 // pred_check_branch
        %332 = sbr.rel (%p330) target = $region28
      $region27: #{decoder_layer1_forward.2} parent=11 // pred_region
        _
      $region28: #{decoder_layer1_forward.2} parent=11 // pred_fallthru
        _
      // Predicated region
      $region29: #{decoder_layer1_forward.2} parent=11 // pred_check
        %p333 = pneg %p175
      $region30: #{decoder_layer1_forward.2} parent=11 // pred_check_branch
        %335 = sbr.rel (%p333) target = $region32
      $region31: #{decoder_layer1_forward.2} parent=11 // pred_region
        _
      $region32: #{decoder_layer1_forward.2} parent=11 // pred_fallthru
        _
      // Predicated region
      $region33: #{decoder_layer1_forward.2} parent=11 // pred_check
        %p336 = pneg %p196
      $region34: #{decoder_layer1_forward.2} parent=11 // pred_check_branch
        %338 = sbr.rel (%p336) target = $region36
      $region35: #{decoder_layer1_forward.2} parent=11 // pred_region
        _
      $region36: #{decoder_layer1_forward.2} parent=11 // pred_fallthru
        _
      // Predicated region
      $region37: #{decoder_layer1_forward.2} parent=11 // pred_check
        %p339 = pneg %p217
      $region38: #{decoder_layer1_forward.2} parent=11 // pred_check_branch
        %341 = sbr.rel (%p339) target = $region40
      $region39: #{decoder_layer1_forward.2} parent=11 // pred_region
        _
      $region40: #{decoder_layer1_forward.2} parent=11 // pred_fallthru
        _
      // Predicated region
      $region41: #{decoder_layer1_forward.2} parent=11 // pred_check
        %p342 = pneg %p238
      $region42: #{decoder_layer1_forward.2} parent=11 // pred_check_branch
        %344 = sbr.rel (%p342) target = $region44
      $region43: #{decoder_layer1_forward.2} parent=11 // pred_region
        _
      $region44: #{decoder_layer1_forward.2} parent=11 // pred_fallthru
        _
      // Predicated region
      $region45: #{decoder_layer1_forward.2} parent=11 // pred_check
        %p345 = pneg %p259
      $region46: #{decoder_layer1_forward.2} parent=11 // pred_check_branch
        %347 = sbr.rel (%p345) target = $region48
      $region47: #{decoder_layer1_forward.2} parent=11 // pred_region
        _
      $region48: #{decoder_layer1_forward.2} parent=11 // pred_fallthru
        _
      // Predicated region
      $region49: #{decoder_layer1_forward.2} parent=11 // pred_check
        %p348 = pneg %p280
      $region50: #{decoder_layer1_forward.2} parent=11 // pred_check_branch
        %350 = sbr.rel (%p348) target = $region52
      $region51: #{decoder_layer1_forward.2} parent=11 // pred_region
        _
      $region52: #{decoder_layer1_forward.2} parent=11 // pred_fallthru
        _
    $region12: #{decoder_layer1_forward.2} parent=5 // pred_fallthru
      _
    %p351 = scmp.lt.s32.totalorder %s18, 2
    // Predicated region
    $region53: #{decoder_layer1_forward.2} parent=5 // pred_check
      %p352 = pneg %p351
    $region54: #{decoder_layer1_forward.2} parent=5 // pred_check_branch
      %354 = sbr.rel (%p352) target = $region56
    $region55: #{decoder_layer1_forward.2} parent=5 // pred_region
      // Predicated region
      $region57: #{decoder_layer1_forward.2} parent=55 // pred_check
        %p355 = pneg %p38
      $region58: #{decoder_layer1_forward.2} parent=55 // pred_check_branch
        %357 = sbr.rel (%p355) target = $region60
      $region59: #{decoder_layer1_forward.2} parent=55 // pred_region
        %p358 = scmp.lt.s32.totalorder %s18, 1
        %s359 = scalar_select %p358, %s18, 1
        %s360 = smul.addr %s359, 8
        %s361 = scalar_lea.vmem %s0, %s360
      $region60: #{decoder_layer1_forward.2} parent=55 // pred_fallthru
        _
      // Predicated region
      $region61: #{decoder_layer1_forward.2} parent=55 // pred_check
        %p362 = pneg %p64
      $region62: #{decoder_layer1_forward.2} parent=55 // pred_check_branch
        %364 = sbr.rel (%p362) target = $region64
      $region63: #{decoder_layer1_forward.2} parent=55 // pred_region
        %p365 = scmp.lt.s32.totalorder %s18, 1
        %s366 = scalar_select %p365, %s18, 1
        %s367 = smul.addr %s366, 8
        %s368 = scalar_lea.vmem %s1, %s367
      $region64: #{decoder_layer1_forward.2} parent=55 // pred_fallthru
        _
    $region56: #{decoder_layer1_forward.2} parent=5 // pred_fallthru
      _
    %p369 = scmp.le.s32.totalorder 1, %s18
    %p370 = scmp.lt.s32.totalorder %s18, 3
    %p371 = pnand %p369, %p370
    %p372 = pneg %p371
    // Predicated region
    $region65: #{decoder_layer1_forward.2} parent=5 // pred_check
      _
    $region66: #{decoder_layer1_forward.2} parent=5 // pred_check_branch
      %374 = sbr.rel (%p371) target = $region68
    $region67: #{decoder_layer1_forward.2} parent=5 // pred_region
      %s375 = ssub.s32 %s18, 1
      %p376 = scmp.lt.s32.totalorder %s23, 1
      %s377 = scalar_select %p376, %s23, 1
      %s378 = smul.addr %s377, 8
      %s379 = scalar_lea.vmem %s0, %s378
      %p380 = pneg %p44
      %p381 = pneg %p41
      %p382 = scmp.lt.s32.totalorder %s23, 1
      %s383 = scalar_select %p382, %s23, 1
      %s384 = smul.addr %s383, 8
      %s385 = scalar_lea.vmem %s1, %s384
      %p386 = pneg %p70
      %p387 = pneg %p67
      %p388 = pneg %p91
      %p389 = pneg %p88
      %p390 = pneg %p112
      %p391 = pneg %p109
      %p392 = pneg %p133
      %p393 = pneg %p130
      %p394 = pneg %p154
      %p395 = pneg %p151
      %p396 = pneg %p175
      %p397 = pneg %p172
      %p398 = pneg %p196
      %p399 = pneg %p193
      %p400 = pneg %p217
      %p401 = pneg %p214
      %p402 = pneg %p238
      %p403 = pneg %p235
      %p404 = pneg %p259
      %p405 = pneg %p256
      %p406 = pneg %p280
      %p407 = pneg %p277
      %p408 = pneg %p306
      %p409 = pneg %p303
      %p410 = scmp.lt.s32.totalorder %s23, 1
      %s411 = scalar_select %p410, %s23, 1
      %s412 = smul.addr %s411, 8
      %s413 = scalar_lea.vmem %s12, %s412
      %p414 = scmp.lt.s32.totalorder %s23, 1
      %s415 = scalar_select %p414, %s23, 1
      %s416 = smul.addr %s415, 8
      %s417 = scalar_lea.vmem %s0, %s416
      %p418 = scmp.lt.s32.totalorder %s23, 1
      %s419 = scalar_select %p418, %s23, 1
      %s420 = smul.addr %s419, 8
      %s421 = scalar_lea.vmem %s1, %s420
      %p422 = scmp.lt.s32.totalorder %s23, 1
      %s423 = scalar_select %p422, %s23, 1
      %s424 = smul.addr %s423, 8
      %s425 = scalar_lea.vmem %s12, %s424
      %v426 = vld [vmem:[%s417] sm:$0xff]
      %v427 = vld [vmem:[%s421] sm:$0xff]
      %v428 = vld [vmem:[%s2] sm:$0xff]
      %v429 = vld [vmem:[%s2 + $0x8] sm:$0xff]
      %v430 = vld [vmem:[%s2 + $0x10] sm:$0xff]
      %v431 = vld [vmem:[%s2 + $0x18] sm:$0xff]
      %v432 = vld [vmem:[%s3] sm:$0x1]
      %v434 = vlaneseq
      %v435 = vshrl.u32 %v434, 7
      %v436 = vsub.s32 0, %v435
      %v437 = vrot.slane %v432, %v436
      %vm439 = vcmask 261120
      %v441 = vsel %vm439, %v426, 0
      %443 = vmatprep.subr.mxu0 0.0
      %444 = vmatpush1.msra.mxu0 %v428
      %445 = vmatprep.subr.mxu0 0.0
      %446 = vmatpush1.msra.mxu0 %v429
      %447 = vmatprep.subr.mxu0 0.0
      %448 = vmatpush1.msra.mxu0 %v430
      %449 = vmatprep.subr.mxu0 0.0
      %450 = vmatpush1.msra.mxu0 %v431
      %451 = vmatprep.subr.mxu0 0.0
      %452 = vmatpush1.msra.mxu0 0.0
      %453 = vmatprep.subr.mxu0 0.0
      %454 = vmatpush1.msra.mxu0 0.0
      %455 = vmatprep.subr.mxu0 0.0
      %456 = vmatpush1.msra.mxu0 0.0
      %457 = vmatprep.subr.mxu0 0.0
      %458 = vmatpush1.msra.mxu0 0.0
      %459 = vmatprep.subr.mxu0 0.0
      %460 = vmatpush1.msra.mxu0 0.0
      %461 = vmatprep.subr.mxu0 0.0
      %462 = vmatpush1.msra.mxu0 0.0
      %463 = vmatprep.subr.mxu0 0.0
      %464 = vmatpush1.msra.mxu0 0.0
      %465 = vmatprep.subr.mxu0 0.0
      %466 = vmatpush1.msra.mxu0 0.0
      %467 = vmatprep.subr.mxu0 0.0
      %468 = vmatpush1.msra.mxu0 0.0
      %469 = vmatprep.subr.mxu0 0.0
      %470 = vmatpush1.msra.mxu0 0.0
      %471 = vmatprep.subr.mxu0 0.0
      %472 = vmatpush1.msra.mxu0 0.0
      %473 = vmatprep.subr.mxu0 0.0
      %474 = vmatpush1.msra.mxu0 0.0
      %475 = vmatprep.subr.mxu0 0.0
      %476 = vmatpush1.msra.mxu0 0.0
      %477 = vmatprep.subr.mxu0 0.0
      %478 = vmatpush1.msra.mxu0 0.0
      %479 = vmatprep.subr.mxu0 0.0
      %480 = vmatpush1.msra.mxu0 0.0
      %481 = vmatprep.subr.mxu0 0.0
      %482 = vmatpush1.msra.mxu0 0.0
      %483 = vmatprep.subr.mxu0 0.0
      %484 = vmatpush1.msra.mxu0 0.0
      %485 = vmatprep.subr.mxu0 0.0
      %486 = vmatpush1.msra.mxu0 0.0
      %487 = vmatprep.subr.mxu0 0.0
      %488 = vmatpush1.msra.mxu0 0.0
      %489 = vmatprep.subr.mxu0 0.0
      %490 = vmatpush1.msra.mxu0 0.0
      %491 = vmatprep.subr.mxu0 0.0
      %492 = vmatpush1.msra.mxu0 0.0
      %493 = vmatprep.subr.mxu0 0.0
      %494 = vmatpush1.msra.mxu0 0.0
      %495 = vmatprep.subr.mxu0 0.0
      %496 = vmatpush1.msra.mxu0 0.0
      %497 = vmatprep.subr.mxu0 0.0
      %498 = vmatpush1.msra.mxu0 0.0
      %499 = vmatprep.subr.mxu0 0.0
      %500 = vmatpush1.msra.mxu0 0.0
      %501 = vmatprep.subr.mxu0 0.0
      %502 = vmatpush1.msra.mxu0 0.0
      %503 = vmatprep.subr.mxu0 0.0
      %504 = vmatpush1.msra.mxu0 0.0
      %505 = vmatprep.subr.mxu0 0.0
      %506 = vmatpush1.msra.mxu0 0.0
      %507 = vmatprep.mubr.f32.mxu0 0.0
      %508 = vmatmul.mubr.f32.gmra.mrb[0].mxu0 %v441
      %v509 = vpop.f32.mrb[0].mxu0
      %v510 = vadd.f32 %v437, %v509
      %v511 = vpop.f32.mrb[0].mxu0
      %512 = vdwg.mxu0
      %v513 = vmax.f32 %v510, 0.0
      %v514 = vld [vmem:[%s4] sm:$0xff]
      %v515 = vld [vmem:[%s4 + $0x8] sm:$0xff]
      %v516 = vld [vmem:[%s4 + $0x10] sm:$0xff]
      %v517 = vld [vmem:[%s4 + $0x18] sm:$0xff]
      %v518 = vld [vmem:[%s4 + $0x20] sm:$0xff]
      %v519 = vld [vmem:[%s4 + $0x28] sm:$0xff]
      %v520 = vld [vmem:[%s4 + $0x30] sm:$0xff]
      %v521 = vld [vmem:[%s4 + $0x38] sm:$0xff]
      %v522 = vld [vmem:[%s5] sm:$0x1]
      %v524 = vlaneseq
      %v525 = vshrl.u32 %v524, 7
      %v526 = vsub.s32 0, %v525
      %v527 = vrot.slane %v522, %v526
      %vm529 = vcmask 523264
      %v531 = vsel %vm529, %v513, 0
      %533 = vmatprep.subr.mxu0 0.0
      %534 = vmatpush1.msra.mxu0 %v514
      %535 = vmatprep.subr.mxu0 0.0
      %536 = vmatpush1.msra.mxu0 %v515
      %537 = vmatprep.subr.mxu0 0.0
      %538 = vmatpush1.msra.mxu0 %v516
      %539 = vmatprep.subr.mxu0 0.0
      %540 = vmatpush1.msra.mxu0 %v517
      %541 = vmatprep.subr.mxu0 0.0
      %542 = vmatpush1.msra.mxu0 %v518
      %543 = vmatprep.subr.mxu0 0.0
      %544 = vmatpush1.msra.mxu0 %v519
      %545 = vmatprep.subr.mxu0 0.0
      %546 = vmatpush1.msra.mxu0 %v520
      %547 = vmatprep.subr.mxu0 0.0
      %548 = vmatpush1.msra.mxu0 %v521
      %549 = vmatprep.subr.mxu0 0.0
      %550 = vmatpush1.msra.mxu0 0.0
      %551 = vmatprep.subr.mxu0 0.0
      %552 = vmatpush1.msra.mxu0 0.0
      %553 = vmatprep.subr.mxu0 0.0
      %554 = vmatpush1.msra.mxu0 0.0
      %555 = vmatprep.subr.mxu0 0.0
      %556 = vmatpush1.msra.mxu0 0.0
      %557 = vmatprep.subr.mxu0 0.0
      %558 = vmatpush1.msra.mxu0 0.0
      %559 = vmatprep.subr.mxu0 0.0
      %560 = vmatpush1.msra.mxu0 0.0
      %561 = vmatprep.subr.mxu0 0.0
      %562 = vmatpush1.msra.mxu0 0.0
      %563 = vmatprep.subr.mxu0 0.0
      %564 = vmatpush1.msra.mxu0 0.0
      %565 = vmatprep.subr.mxu0 0.0
      %566 = vmatpush1.msra.mxu0 0.0
      %567 = vmatprep.subr.mxu0 0.0
      %568 = vmatpush1.msra.mxu0 0.0
      %569 = vmatprep.subr.mxu0 0.0
      %570 = vmatpush1.msra.mxu0 0.0
      %571 = vmatprep.subr.mxu0 0.0
      %572 = vmatpush1.msra.mxu0 0.0
      %573 = vmatprep.subr.mxu0 0.0
      %574 = vmatpush1.msra.mxu0 0.0
      %575 = vmatprep.subr.mxu0 0.0
      %576 = vmatpush1.msra.mxu0 0.0
      %577 = vmatprep.subr.mxu0 0.0
      %578 = vmatpush1.msra.mxu0 0.0
      %579 = vmatprep.subr.mxu0 0.0
      %580 = vmatpush1.msra.mxu0 0.0
      %581 = vmatprep.subr.mxu0 0.0
      %582 = vmatpush1.msra.mxu0 0.0
      %583 = vmatprep.subr.mxu0 0.0
      %584 = vmatpush1.msra.mxu0 0.0
      %585 = vmatprep.subr.mxu0 0.0
      %586 = vmatpush1.msra.mxu0 0.0
      %587 = vmatprep.subr.mxu0 0.0
      %588 = vmatpush1.msra.mxu0 0.0
      %589 = vmatprep.subr.mxu0 0.0
      %590 = vmatpush1.msra.mxu0 0.0
      %591 = vmatprep.subr.mxu0 0.0
      %592 = vmatpush1.msra.mxu0 0.0
      %593 = vmatprep.subr.mxu0 0.0
      %594 = vmatpush1.msra.mxu0 0.0
      %595 = vmatprep.subr.mxu0 0.0
      %596 = vmatpush1.msra.mxu0 0.0
      %597 = vmatprep.mubr.f32.mxu0 0.0
      %598 = vmatmul.mubr.f32.gmra.mrb[0].mxu0 %v531
      %v599 = vpop.f32.mrb[0].mxu0
      %v600 = vadd.f32 %v527, %v599
      %v601 = vpop.f32.mrb[0].mxu0
      %602 = vdwg.mxu0
      %v603 = vadd.f32 %v600, %v426
      %v604 = vsel %vm439, %v603, 0.0
      %605 = vadd.xlane.f32.xlu0 %v604
      %v606 = vpop.xlane.xlu0 %605
      %v607 = vrcp.pop 32.0
      %v608 = vmul.f32 %v606, %v607
      %v609 = vsub.f32 %v603, %v608
      %v610 = vmul.f32 %v609, %v609
      %v611 = vsel %vm439, %v610, 0.0
      %612 = vadd.xlane.f32.xlu0 %v611
      %v613 = vpop.xlane.xlu0 %612
      %v614 = vmul.f32 %v613, %v607
      %v615 = vadd.f32 %v614, 1e-05
      %v616 = vrsqrt.pop %v615
      %v617 = vmul.f32 %v609, %v616
      %v618 = vld [vmem:[%s6] sm:$0x1]
      %v620 = vlaneseq
      %v621 = vshrl.u32 %v620, 7
      %v622 = vsub.s32 0, %v621
      %v623 = vrot.slane %v618, %v622
      %v625 = vmul.f32 %v617, %v623
      %v626 = vld [vmem:[%s7] sm:$0x1]
      %v628 = vlaneseq
      %v629 = vshrl.u32 %v628, 7
      %v630 = vsub.s32 0, %v629
      %v631 = vrot.slane %v626, %v630
      %v633 = vadd.f32 %v625, %v631
      %635 = vset.pattern.permute.xlu0 0
      %636 = vperm.xlu0 %635, %v427
      %v637 = vpop.permute.xlu0 %636
      %v639 = vmul.f32 %v633, %v637
      %v640 = vld [vmem:[%s8] sm:$0xff]
      %v641 = vld [vmem:[%s8 + $0x8] sm:$0xff]
      %v642 = vld [vmem:[%s8 + $0x10] sm:$0xff]
      %v643 = vld [vmem:[%s8 + $0x18] sm:$0xff]
      %v644 = vld [vmem:[%s9] sm:$0x1]
      %v646 = vlaneseq
      %v647 = vshrl.u32 %v646, 7
      %v648 = vsub.s32 0, %v647
      %v649 = vrot.slane %v644, %v648
      %v652 = vsel %vm439, %v639, 0
      %654 = vmatprep.subr.mxu0 0.0
      %655 = vmatpush1.msra.mxu0 %v640
      %656 = vmatprep.subr.mxu0 0.0
      %657 = vmatpush1.msra.mxu0 %v641
      %658 = vmatprep.subr.mxu0 0.0
      %659 = vmatpush1.msra.mxu0 %v642
      %660 = vmatprep.subr.mxu0 0.0
      %661 = vmatpush1.msra.mxu0 %v643
      %662 = vmatprep.subr.mxu0 0.0
      %663 = vmatpush1.msra.mxu0 0.0
      %664 = vmatprep.subr.mxu0 0.0
      %665 = vmatpush1.msra.mxu0 0.0
      %666 = vmatprep.subr.mxu0 0.0
      %667 = vmatpush1.msra.mxu0 0.0
      %668 = vmatprep.subr.mxu0 0.0
      %669 = vmatpush1.msra.mxu0 0.0
      %670 = vmatprep.subr.mxu0 0.0
      %671 = vmatpush1.msra.mxu0 0.0
      %672 = vmatprep.subr.mxu0 0.0
      %673 = vmatpush1.msra.mxu0 0.0
      %674 = vmatprep.subr.mxu0 0.0
      %675 = vmatpush1.msra.mxu0 0.0
      %676 = vmatprep.subr.mxu0 0.0
      %677 = vmatpush1.msra.mxu0 0.0
      %678 = vmatprep.subr.mxu0 0.0
      %679 = vmatpush1.msra.mxu0 0.0
      %680 = vmatprep.subr.mxu0 0.0
      %681 = vmatpush1.msra.mxu0 0.0
      %682 = vmatprep.subr.mxu0 0.0
      %683 = vmatpush1.msra.mxu0 0.0
      %684 = vmatprep.subr.mxu0 0.0
      %685 = vmatpush1.msra.mxu0 0.0
      %686 = vmatprep.subr.mxu0 0.0
      %687 = vmatpush1.msra.mxu0 0.0
      %688 = vmatprep.subr.mxu0 0.0
      %689 = vmatpush1.msra.mxu0 0.0
      %690 = vmatprep.subr.mxu0 0.0
      %691 = vmatpush1.msra.mxu0 0.0
      %692 = vmatprep.subr.mxu0 0.0
      %693 = vmatpush1.msra.mxu0 0.0
      %694 = vmatprep.subr.mxu0 0.0
      %695 = vmatpush1.msra.mxu0 0.0
      %696 = vmatprep.subr.mxu0 0.0
      %697 = vmatpush1.msra.mxu0 0.0
      %698 = vmatprep.subr.mxu0 0.0
      %699 = vmatpush1.msra.mxu0 0.0
      %700 = vmatprep.subr.mxu0 0.0
      %701 = vmatpush1.msra.mxu0 0.0
      %702 = vmatprep.subr.mxu0 0.0
      %703 = vmatpush1.msra.mxu0 0.0
      %704 = vmatprep.subr.mxu0 0.0
      %705 = vmatpush1.msra.mxu0 0.0
      %706 = vmatprep.subr.mxu0 0.0
      %707 = vmatpush1.msra.mxu0 0.0
      %708 = vmatprep.subr.mxu0 0.0
      %709 = vmatpush1.msra.mxu0 0.0
      %710 = vmatprep.subr.mxu0 0.0
      %711 = vmatpush1.msra.mxu0 0.0
      %712 = vmatprep.subr.mxu0 0.0
      %713 = vmatpush1.msra.mxu0 0.0
      %714 = vmatprep.subr.mxu0 0.0
      %715 = vmatpush1.msra.mxu0 0.0
      %716 = vmatprep.subr.mxu0 0.0
      %717 = vmatpush1.msra.mxu0 0.0
      %718 = vmatprep.mubr.f32.mxu0 0.0
      %719 = vmatmul.mubr.f32.gmra.mrb[0].mxu0 %v652
      %v720 = vpop.f32.mrb[0].mxu0
      %v721 = vadd.f32 %v649, %v720
      %v722 = vpop.f32.mrb[0].mxu0
      %723 = vdwg.mxu0
      %v724 = vmax.f32 %v721, 0.0
      %v725 = vld [vmem:[%s10] sm:$0xff]
      %v726 = vld [vmem:[%s10 + $0x8] sm:$0xff]
      %v727 = vld [vmem:[%s10 + $0x10] sm:$0xff]
      %v728 = vld [vmem:[%s10 + $0x18] sm:$0xff]
      %v729 = vld [vmem:[%s10 + $0x20] sm:$0xff]
      %v730 = vld [vmem:[%s10 + $0x28] sm:$0xff]
      %v731 = vld [vmem:[%s10 + $0x30] sm:$0xff]
      %v732 = vld [vmem:[%s10 + $0x38] sm:$0xff]
      %v734 = vsel %vm529, %v724, 0
      %736 = vmatprep.subr.mxu0 0.0
      %737 = vmatpush1.msra.mxu0 %v725
      %738 = vmatprep.subr.mxu0 0.0
      %739 = vmatpush1.msra.mxu0 %v726
      %740 = vmatprep.subr.mxu0 0.0
      %741 = vmatpush1.msra.mxu0 %v727
      %742 = vmatprep.subr.mxu0 0.0
      %743 = vmatpush1.msra.mxu0 %v728
      %744 = vmatprep.subr.mxu0 0.0
      %745 = vmatpush1.msra.mxu0 %v729
      %746 = vmatprep.subr.mxu0 0.0
      %747 = vmatpush1.msra.mxu0 %v730
      %748 = vmatprep.subr.mxu0 0.0
      %749 = vmatpush1.msra.mxu0 %v731
      %750 = vmatprep.subr.mxu0 0.0
      %751 = vmatpush1.msra.mxu0 %v732
      %752 = vmatprep.subr.mxu0 0.0
      %753 = vmatpush1.msra.mxu0 0.0
      %754 = vmatprep.subr.mxu0 0.0
      %755 = vmatpush1.msra.mxu0 0.0
      %756 = vmatprep.subr.mxu0 0.0
      %757 = vmatpush1.msra.mxu0 0.0
      %758 = vmatprep.subr.mxu0 0.0
      %759 = vmatpush1.msra.mxu0 0.0
      %760 = vmatprep.subr.mxu0 0.0
      %761 = vmatpush1.msra.mxu0 0.0
      %762 = vmatprep.subr.mxu0 0.0
      %763 = vmatpush1.msra.mxu0 0.0
      %764 = vmatprep.subr.mxu0 0.0
      %765 = vmatpush1.msra.mxu0 0.0
      %766 = vmatprep.subr.mxu0 0.0
      %767 = vmatpush1.msra.mxu0 0.0
      %768 = vmatprep.subr.mxu0 0.0
      %769 = vmatpush1.msra.mxu0 0.0
      %770 = vmatprep.subr.mxu0 0.0
      %771 = vmatpush1.msra.mxu0 0.0
      %772 = vmatprep.subr.mxu0 0.0
      %773 = vmatpush1.msra.mxu0 0.0
      %774 = vmatprep.subr.mxu0 0.0
      %775 = vmatpush1.msra.mxu0 0.0
      %776 = vmatprep.subr.mxu0 0.0
      %777 = vmatpush1.msra.mxu0 0.0
      %778 = vmatprep.subr.mxu0 0.0
      %779 = vmatpush1.msra.mxu0 0.0
      %780 = vmatprep.subr.mxu0 0.0
      %781 = vmatpush1.msra.mxu0 0.0
      %782 = vmatprep.subr.mxu0 0.0
      %783 = vmatpush1.msra.mxu0 0.0
      %784 = vmatprep.subr.mxu0 0.0
      %785 = vmatpush1.msra.mxu0 0.0
      %786 = vmatprep.subr.mxu0 0.0
      %787 = vmatpush1.msra.mxu0 0.0
      %788 = vmatprep.subr.mxu0 0.0
      %789 = vmatpush1.msra.mxu0 0.0
      %790 = vmatprep.subr.mxu0 0.0
      %791 = vmatpush1.msra.mxu0 0.0
      %792 = vmatprep.subr.mxu0 0.0
      %793 = vmatpush1.msra.mxu0 0.0
      %794 = vmatprep.subr.mxu0 0.0
      %795 = vmatpush1.msra.mxu0 0.0
      %796 = vmatprep.subr.mxu0 0.0
      %797 = vmatpush1.msra.mxu0 0.0
      %798 = vmatprep.subr.mxu0 0.0
      %799 = vmatpush1.msra.mxu0 0.0
      %800 = vmatprep.mubr.f32.mxu0 0.0
      %801 = vmatmul.mubr.f32.gmra.mrb[0].mxu0 %v734
      %v802 = vpop.f32.mrb[0].mxu0
      %v803 = vadd.f32 0.0, %v802
      %v804 = vpop.f32.mrb[0].mxu0
      %805 = vdwg.mxu0
      %v806 = vld [vmem:[%s11 + $0x8] sm:$0xff]
      %v807 = vld [vmem:[%s11 + $0x10] sm:$0xf]
      %v808 = vlaneseq
      %v809 = vshrl.u32 %v808, 7
      %v810 = vlaneseq
      %v811 = vshrl.u32 %v810, 7
      %v812 = vsub.s32 3, %v811
      %v813 = vrot.slane %v807, %v812
      %v814 = vmul.f32 %v803, %v813
      %vm815 = vcmp.ge.s32.totalorder %v809, 1
      %v816 = vrot.slane %v803, 7
      %v817 = vsel %vm815, 1, 0
      %vm818 = vcmp.eq.s32.totalorder %v817, 1
      %v819 = vsel %vm818, %v816, 0.0
      %v820 = vlaneseq
      %v821 = vshrl.u32 %v820, 7
      %v822 = vsub.s32 2, %v821
      %v823 = vrot.slane %v807, %v822
      %v824 = vmul.f32 %v819, %v823
      %vm825 = vcmp.ge.s32.totalorder %v809, 2
      %v826 = vrot.slane %v803, 6
      %v827 = vsel %vm825, 1, 0
      %vm828 = vcmp.eq.s32.totalorder %v827, 1
      %v829 = vsel %vm828, %v826, 0.0
      %v830 = vlaneseq
      %v831 = vshrl.u32 %v830, 7
      %v832 = vsub.s32 1, %v831
      %v833 = vrot.slane %v807, %v832
      %v834 = vmul.f32 %v829, %v833
      %vm835 = vcmp.ge.s32.totalorder %v809, 3
      %v836 = vrot.slane %v803, 5
      %v837 = vsel %vm835, 1, 0
      %vm838 = vcmp.eq.s32.totalorder %v837, 1
      %v839 = vsel %vm838, %v836, 0.0
      %v840 = vlaneseq
      %v841 = vshrl.u32 %v840, 7
      %v842 = vsub.s32 0, %v841
      %v843 = vrot.slane %v807, %v842
      %v844 = vmul.f32 %v839, %v843
      %vm845 = vcmp.ge.s32.totalorder %v809, 4
      %v846 = vrot.slane %v803, 4
      %v847 = vsel %vm845, 1, 0
      %vm848 = vcmp.eq.s32.totalorder %v847, 1
      %v849 = vsel %vm848, %v846, 0.0
      %v850 = vlaneseq
      %v851 = vshrl.u32 %v850, 7
      %v852 = vsub.s32 7, %v851
      %v853 = vrot.slane %v806, %v852
      %v854 = vmul.f32 %v849, %v853
      %v855 = vadd.f32 %v814, %v854
      %vm856 = vcmp.ge.s32.totalorder %v809, 5
      %v857 = vrot.slane %v803, 3
      %v858 = vsel %vm856, 1, 0
      %vm859 = vcmp.eq.s32.totalorder %v858, 1
      %v860 = vsel %vm859, %v857, 0.0
      %v861 = vlaneseq
      %v862 = vshrl.u32 %v861, 7
      %v863 = vsub.s32 6, %v862
      %v864 = vrot.slane %v806, %v863
      %v865 = vmul.f32 %v860, %v864
      %v866 = vadd.f32 %v824, %v865
      %vm867 = vcmp.ge.s32.totalorder %v809, 6
      %v868 = vrot.slane %v803, 2
      %v869 = vsel %vm867, 1, 0
      %vm870 = vcmp.eq.s32.totalorder %v869, 1
      %v871 = vsel %vm870, %v868, 0.0
      %v872 = vlaneseq
      %v873 = vshrl.u32 %v872, 7
      %v874 = vsub.s32 5, %v873
      %v875 = vrot.slane %v806, %v874
      %v876 = vmul.f32 %v871, %v875
      %v877 = vadd.f32 %v834, %v876
      %vm878 = vcmp.ge.s32.totalorder %v809, 7
      %v879 = vrot.slane %v803, 1
      %v880 = vsel %vm878, 1, 0
      %vm881 = vcmp.eq.s32.totalorder %v880, 1
      %v882 = vsel %vm881, %v879, 0.0
      %v883 = vlaneseq
      %v884 = vshrl.u32 %v883, 7
      %v885 = vsub.s32 4, %v884
      %v886 = vrot.slane %v806, %v885
      %v887 = vmul.f32 %v882, %v886
      %v888 = vadd.f32 %v844, %v887
      %v889 = vadd.f32 %v855, %v866
      %v890 = vadd.f32 %v889, %v877
      %v891 = vadd.f32 %v890, %v888
      %v892 = vadd.f32 %v803, %v891
      %v893 = vmul.f32 %v892, %v637
      %894 = vst.msk [vmem:[%s425] sm:$0xff] %vm439, %v893
      %p895 = scmp.lt.s32.totalorder %s23, 1
      %s896 = scalar_select %p895, %s23, 1
      %s897 = smul.addr %s896, 8
      %s898 = scalar_lea.vmem %s12, %s897
      // Predicated region
      $region69: #{decoder_layer1_forward.2} parent=67 // pred_check
        %p899 = pneg %p303
      $region70: #{decoder_layer1_forward.2} parent=67 // pred_check_branch
        %901 = sbr.rel (%p899) target = $region72
      $region71: #{decoder_layer1_forward.2} parent=67 // pred_region
        _
      $region72: #{decoder_layer1_forward.2} parent=67 // pred_fallthru
        _
    $region68: #{decoder_layer1_forward.2} parent=5 // pred_fallthru
      _
    %p902 = scmp.le.s32.totalorder 2, %s18
    // Predicated region
    $region73: #{decoder_layer1_forward.2} parent=5 // pred_check
      %p903 = pneg %p902
    $region74: #{decoder_layer1_forward.2} parent=5 // pred_check_branch
      %905 = sbr.rel (%p903) target = $region76
    $region75: #{decoder_layer1_forward.2} parent=5 // pred_region
      %s906 = ssub.s32 %s18, 2
      // Predicated region
      $region77: #{decoder_layer1_forward.2} parent=75 // pred_check
        %p907 = pneg %p309
      $region78: #{decoder_layer1_forward.2} parent=75 // pred_check_branch
        %909 = sbr.rel (%p907) target = $region80
      $region79: #{decoder_layer1_forward.2} parent=75 // pred_region
        %p910 = scmp.lt.s32.totalorder %s24, 1
        %s911 = scalar_select %p910, %s24, 1
        %s912 = smul.addr %s911, 8
        %s913 = scalar_lea.vmem %s12, %s912
      $region80: #{decoder_layer1_forward.2} parent=75 // pred_fallthru
        _
    $region76: #{decoder_layer1_forward.2} parent=5 // pred_fallthru
      _
  $region6: #{decoder_layer1_forward.2} parent=0 // loop_footer
    %s22 = sadd.s32 1, %s18
  $region7: #{decoder_layer1_forward.2} parent=0 // loop_footer_branch
    %17 = sbr.rel target = $region3
  $region8: #{decoder_layer1_forward.2} parent=0 // loop_exit
    _

// kernel: decoder_layer1_forward.3
$region0: #{decoder_layer1_forward.3}
  #allocation0 [shape = 'u32[]', space=smem, size = 0x4, offset = 0x4, fixed_abs, tag = 'smem constant byte address 0x4 - core index']
  #allocation1 [shape = 'u32[144,128]{1,0:T(1,128)}', space=vmem, size = 0x12000, scoped, tag = 'internal scratch']
  #allocation2 [shape = 'f32[8,32]{1,0:T(8,128)}', space=vmem, size = 0x1000, scoped, tag = 'scratch operand']
  %s0 = inlined_call_operand.vmem [shape: f32[2,8,32], index: 0, kind: input, shape index: {}]
  %s1 = inlined_call_operand.vmem [shape: f32[2,8,32], index: 1, kind: input, shape index: {}]
  %s2 = inlined_call_operand.vmem [shape: s8[2,8,8], index: 2, kind: input, shape index: {}]
  %s3 = inlined_call_operand.vmem [shape: f32[2,8,1], index: 3, kind: input, shape index: {}]
  %s4 = inlined_call_operand.vmem [shape: f32[4,32,8], index: 4, kind: input, shape index: {}]
  %s5 = inlined_call_operand.vmem [shape: f32[4,1,8], index: 5, kind: input, shape index: {}]
  %s6 = inlined_call_operand.vmem [shape: f32[4,32,8], index: 6, kind: input, shape index: {}]
  %s7 = inlined_call_operand.vmem [shape: f32[4,1,8], index: 7, kind: input, shape index: {}]
  %s8 = inlined_call_operand.vmem [shape: f32[4,32,8], index: 8, kind: input, shape index: {}]
  %s9 = inlined_call_operand.vmem [shape: f32[4,1,8], index: 9, kind: input, shape index: {}]
  %s10 = inlined_call_operand.vmem [shape: f32[4,8,32], index: 10, kind: input, shape index: {}]
  %s11 = inlined_call_operand.vmem [shape: f32[1,32], index: 11, kind: input, shape index: {}]
  %s12 = inlined_call_operand.vmem [shape: f32[1,32], index: 12, kind: input, shape index: {}]
  %s13 = inlined_call_operand.vmem [shape: f32[1,32], index: 13, kind: input, shape index: {}]
  %s14 = inlined_call_operand.hbm [shape: f32[4,2,8,8], index: 14, kind: output, shape index: {0}]
  %s15 = inlined_call_operand.hbm [shape: f32[2,8,32], index: 15, kind: output, shape index: {1}]
  %16 = xla_tuple %s14, %s15
  %s17 = sld [smem:[#allocation0]]
  $region109: #{decoder_layer1_forward.3} parent=0
    _
  %s19 = ssub.s32 1, %s17
  %s20 = scalar_select 0, %s19, %s17
  $region1: #{decoder_layer1_forward.3} parent=0
    #allocation3 [shape = 'u8[8192]{0}', space=vmem, size = 0x2000, scoped, tag = 'output window, operand 0']
    #allocation4 [shape = 's32[2]{0}', space=sflag, size = 0x8, scoped, tag = 'scoped memory for decoder_layer1_forward.3']
    #allocation5 [shape = 'u8[8192]{0}', space=vmem, size = 0x2000, scoped, tag = 'output window, operand 1']
    #allocation6 [shape = 's32[2]{0}', space=sflag, size = 0x8, scoped, tag = 'scoped memory for decoder_layer1_forward.3']
    %21 = vsyncpa [#allocation4], 0
    %s22 = scalar_lea.sflag [#allocation4], 1
    %23 = vsyncpa %s22, 0
    %24 = vsyncpa [#allocation6], 0
    %s25 = scalar_lea.sflag [#allocation6], 1
    %26 = vsyncpa %s25, 0
    loop: start=0, step=1, limit=10
    $region2: #{decoder_layer1_forward.3} parent=1 // loop_pre_header
      _
    $region3: #{decoder_layer1_forward.3} parent=1 // loop_header
      %s28 = sphi 0, %s32
      %p29 = scmp.ge.s32.totalorder %s28, 10
      %s35 = sphi 0, %s47
      %s36 = sphi 0, %s43
      %s37 = sphi 0, %s35
      %s38 = sphi 0, %s36
      %s39 = sphi 0, %s37
      %s40 = sphi 0, %s38
      %s50 = sphi 0, %s52
      %s53 = sphi 0, %s50
      %s54 = sphi 0, %s53
      %s70 = sphi 0, %s54
      %s76 = sphi 0, %s78
      %s79 = sphi 0, %s76
      %s80 = sphi 0, %s79
      %s96 = sphi 0, %s80
      %s102 = sphi 0, %s104
      %s105 = sphi 0, %s102
      %s106 = sphi 0, %s105
      %s122 = sphi 0, %s106
      %s128 = sphi 0, %s130
      %s131 = sphi 0, %s128
      %s132 = sphi 0, %s131
      %s148 = sphi 0, %s132
      %s154 = sphi 0, %s156
      %s157 = sphi 0, %s154
      %s158 = sphi 0, %s157
      %s174 = sphi 0, %s158
      %s180 = sphi 0, %s182
      %s183 = sphi 0, %s180
      %s184 = sphi 0, %s183
      %s200 = sphi 0, %s184
      %s206 = sphi 0, %s208
      %s209 = sphi 0, %s206
      %s210 = sphi 0, %s209
      %s226 = sphi 0, %s210
      %s232 = sphi 0, %s234
      %s235 = sphi 0, %s232
      %s236 = sphi 0, %s235
      %s252 = sphi 0, %s236
      %s258 = sphi 0, %s260
      %s261 = sphi 0, %s258
      %s262 = sphi 0, %s261
      %s278 = sphi 0, %s262
      %s284 = sphi 0, %s286
      %s287 = sphi 0, %s284
      %s288 = sphi 0, %s287
      %s304 = sphi 0, %s288
      %s310 = sphi 0, %s312
      %s313 = sphi 0, %s310
      %s314 = sphi 0, %s313
      %s330 = sphi 0, %s314
      %s334 = sphi 0, %s334
      %s336 = sphi 0, %s334
      %s337 = sphi 0, %s336
      %s351 = sphi 0, %s337
      %s355 = sphi 0, %s355
      %s357 = sphi 0, %s355
      %s358 = sphi 0, %s357
      %s372 = sphi 0, %s358
      %s376 = sphi 0, %s376
      %s378 = sphi 0, %s376
      %s379 = sphi 0, %s378
      %s393 = sphi 0, %s379
      %s401 = sphi 0, %s403
      %s404 = sphi 0, %s401
      %s405 = sphi 0, %s404
      %s421 = sphi 0, %s405
      %s427 = sphi 0, %s429
      %s430 = sphi 0, %s427
      %s431 = sphi 0, %s430
      %s447 = sphi 0, %s431
    $region4: #{decoder_layer1_forward.3} parent=1 // loop_header_branch
      %31 = sbr.rel (%p29) target = $region8
    $region5: #{decoder_layer1_forward.3} parent=1 // loop_body
      %s33 = ssub.s32 %s28, 1
      %s34 = ssub.s32 %s28, 2
      %s41 = sadd.s32 1, %s36
      %p42 = scmp.ge.s32.totalorder %s41, 4
      %s43 = scalar_select %p42, 0, %s41
      %s44 = sadd.s32 1, %s35
      %s45 = scalar_select %p42, %s44, %s35
      %p46 = scmp.ge.s32.totalorder %s45, 2
      %s47 = scalar_select %p46, 0, %s45
      %s48 = ssub.s32 %s35, %s47
      %p49 = scmp.eq.s32.totalorder %s48, 0
      %s51 = sadd.s32 %s50, 1
      %s52 = scalar_select %p49, %s50, %s51
      %p55 = pneg %p49
      %p56 = scmp.eq.s32.totalorder %s28, 7
      %p57 = por %p55, %p56
      %p58 = scmp.ne.s32.totalorder %s50, %s53
      %p59 = scmp.eq.s32.totalorder %s28, 0
      %p60 = por %p58, %p59
      %p61 = scmp.ne.s32.totalorder %s50, %s53
      %p62 = scmp.eq.s32.totalorder %s33, 7
      %p63 = por %p61, %p62
      %p64 = scmp.ne.s32.totalorder %s53, %s54
      %p65 = scmp.eq.s32.totalorder %s33, 0
      %p66 = por %p64, %p65
      %p67 = scmp.ne.s32.totalorder %s53, %s54
      %p68 = scmp.eq.s32.totalorder %s34, 7
      %p69 = por %p67, %p68
      %p71 = scmp.ne.s32.totalorder %s54, %s70
      %p72 = scmp.eq.s32.totalorder %s34, 0
      %p73 = por %p71, %p72
      %s74 = ssub.s32 %s35, %s47
      %p75 = scmp.eq.s32.totalorder %s74, 0
      %s77 = sadd.s32 %s76, 1
      %s78 = scalar_select %p75, %s76, %s77
      %p81 = pneg %p75
      %p82 = scmp.eq.s32.totalorder %s28, 7
      %p83 = por %p81, %p82
      %p84 = scmp.ne.s32.totalorder %s76, %s79
      %p85 = scmp.eq.s32.totalorder %s28, 0
      %p86 = por %p84, %p85
      %p87 = scmp.ne.s32.totalorder %s76, %s79
      %p88 = scmp.eq.s32.totalorder %s33, 7
      %p89 = por %p87, %p88
      %p90 = scmp.ne.s32.totalorder %s79, %s80
      %p91 = scmp.eq.s32.totalorder %s33, 0
      %p92 = por %p90, %p91
      %p93 = scmp.ne.s32.totalorder %s79, %s80
      %p94 = scmp.eq.s32.totalorder %s34, 7
      %p95 = por %p93, %p94
      %p97 = scmp.ne.s32.totalorder %s80, %s96
      %p98 = scmp.eq.s32.totalorder %s34, 0
      %p99 = por %p97, %p98
      %s100 = ssub.s32 %s35, %s47
      %p101 = scmp.eq.s32.totalorder %s100, 0
      %s103 = sadd.s32 %s102, 1
      %s104 = scalar_select %p101, %s102, %s103
      %p107 = pneg %p101
      %p108 = scmp.eq.s32.totalorder %s28, 7
      %p109 = por %p107, %p108
      %p110 = scmp.ne.s32.totalorder %s102, %s105
      %p111 = scmp.eq.s32.totalorder %s28, 0
      %p112 = por %p110, %p111
      %p113 = scmp.ne.s32.totalorder %s102, %s105
      %p114 = scmp.eq.s32.totalorder %s33, 7
      %p115 = por %p113, %p114
      %p116 = scmp.ne.s32.totalorder %s105, %s106
      %p117 = scmp.eq.s32.totalorder %s33, 0
      %p118 = por %p116, %p117
      %p119 = scmp.ne.s32.totalorder %s105, %s106
      %p120 = scmp.eq.s32.totalorder %s34, 7
      %p121 = por %p119, %p120
      %p123 = scmp.ne.s32.totalorder %s106, %s122
      %p124 = scmp.eq.s32.totalorder %s34, 0
      %p125 = por %p123, %p124
      %s126 = ssub.s32 %s35, %s47
      %p127 = scmp.eq.s32.totalorder %s126, 0
      %s129 = sadd.s32 %s128, 1
      %s130 = scalar_select %p127, %s128, %s129
      %p133 = pneg %p127
      %p134 = scmp.eq.s32.totalorder %s28, 7
      %p135 = por %p133, %p134
      %p136 = scmp.ne.s32.totalorder %s128, %s131
      %p137 = scmp.eq.s32.totalorder %s28, 0
      %p138 = por %p136, %p137
      %p139 = scmp.ne.s32.totalorder %s128, %s131
      %p140 = scmp.eq.s32.totalorder %s33, 7
      %p141 = por %p139, %p140
      %p142 = scmp.ne.s32.totalorder %s131, %s132
      %p143 = scmp.eq.s32.totalorder %s33, 0
      %p144 = por %p142, %p143
      %p145 = scmp.ne.s32.totalorder %s131, %s132
      %p146 = scmp.eq.s32.totalorder %s34, 7
      %p147 = por %p145, %p146
      %p149 = scmp.ne.s32.totalorder %s132, %s148
      %p150 = scmp.eq.s32.totalorder %s34, 0
      %p151 = por %p149, %p150
      %s152 = ssub.s32 %s36, %s43
      %p153 = scmp.eq.s32.totalorder %s152, 0
      %s155 = sadd.s32 %s154, 1
      %s156 = scalar_select %p153, %s154, %s155
      %p159 = pneg %p153
      %p160 = scmp.eq.s32.totalorder %s28, 7
      %p161 = por %p159, %p160
      %p162 = scmp.ne.s32.totalorder %s154, %s157
      %p163 = scmp.eq.s32.totalorder %s28, 0
      %p164 = por %p162, %p163
      %p165 = scmp.ne.s32.totalorder %s154, %s157
      %p166 = scmp.eq.s32.totalorder %s33, 7
      %p167 = por %p165, %p166
      %p168 = scmp.ne.s32.totalorder %s157, %s158
      %p169 = scmp.eq.s32.totalorder %s33, 0
      %p170 = por %p168, %p169
      %p171 = scmp.ne.s32.totalorder %s157, %s158
      %p172 = scmp.eq.s32.totalorder %s34, 7
      %p173 = por %p171, %p172
      %p175 = scmp.ne.s32.totalorder %s158, %s174
      %p176 = scmp.eq.s32.totalorder %s34, 0
      %p177 = por %p175, %p176
      %s178 = ssub.s32 %s36, %s43
      %p179 = scmp.eq.s32.totalorder %s178, 0
      %s181 = sadd.s32 %s180, 1
      %s182 = scalar_select %p179, %s180, %s181
      %p185 = pneg %p179
      %p186 = scmp.eq.s32.totalorder %s28, 7
      %p187 = por %p185, %p186
      %p188 = scmp.ne.s32.totalorder %s180, %s183
      %p189 = scmp.eq.s32.totalorder %s28, 0
      %p190 = por %p188, %p189
      %p191 = scmp.ne.s32.totalorder %s180, %s183
      %p192 = scmp.eq.s32.totalorder %s33, 7
      %p193 = por %p191, %p192
      %p194 = scmp.ne.s32.totalorder %s183, %s184
      %p195 = scmp.eq.s32.totalorder %s33, 0
      %p196 = por %p194, %p195
      %p197 = scmp.ne.s32.totalorder %s183, %s184
      %p198 = scmp.eq.s32.totalorder %s34, 7
      %p199 = por %p197, %p198
      %p201 = scmp.ne.s32.totalorder %s184, %s200
      %p202 = scmp.eq.s32.totalorder %s34, 0
      %p203 = por %p201, %p202
      %s204 = ssub.s32 %s36, %s43
      %p205 = scmp.eq.s32.totalorder %s204, 0
      %s207 = sadd.s32 %s206, 1
      %s208 = scalar_select %p205, %s206, %s207
      %p211 = pneg %p205
      %p212 = scmp.eq.s32.totalorder %s28, 7
      %p213 = por %p211, %p212
      %p214 = scmp.ne.s32.totalorder %s206, %s209
      %p215 = scmp.eq.s32.totalorder %s28, 0
      %p216 = por %p214, %p215
      %p217 = scmp.ne.s32.totalorder %s206, %s209
      %p218 = scmp.eq.s32.totalorder %s33, 7
      %p219 = por %p217, %p218
      %p220 = scmp.ne.s32.totalorder %s209, %s210
      %p221 = scmp.eq.s32.totalorder %s33, 0
      %p222 = por %p220, %p221
      %p223 = scmp.ne.s32.totalorder %s209, %s210
      %p224 = scmp.eq.s32.totalorder %s34, 7
      %p225 = por %p223, %p224
      %p227 = scmp.ne.s32.totalorder %s210, %s226
      %p228 = scmp.eq.s32.totalorder %s34, 0
      %p229 = por %p227, %p228
      %s230 = ssub.s32 %s36, %s43
      %p231 = scmp.eq.s32.totalorder %s230, 0
      %s233 = sadd.s32 %s232, 1
      %s234 = scalar_select %p231, %s232, %s233
      %p237 = pneg %p231
      %p238 = scmp.eq.s32.totalorder %s28, 7
      %p239 = por %p237, %p238
      %p240 = scmp.ne.s32.totalorder %s232, %s235
      %p241 = scmp.eq.s32.totalorder %s28, 0
      %p242 = por %p240, %p241
      %p243 = scmp.ne.s32.totalorder %s232, %s235
      %p244 = scmp.eq.s32.totalorder %s33, 7
      %p245 = por %p243, %p244
      %p246 = scmp.ne.s32.totalorder %s235, %s236
      %p247 = scmp.eq.s32.totalorder %s33, 0
      %p248 = por %p246, %p247
      %p249 = scmp.ne.s32.totalorder %s235, %s236
      %p250 = scmp.eq.s32.totalorder %s34, 7
      %p251 = por %p249, %p250
      %p253 = scmp.ne.s32.totalorder %s236, %s252
      %p254 = scmp.eq.s32.totalorder %s34, 0
      %p255 = por %p253, %p254
      %s256 = ssub.s32 %s36, %s43
      %p257 = scmp.eq.s32.totalorder %s256, 0
      %s259 = sadd.s32 %s258, 1
      %s260 = scalar_select %p257, %s258, %s259
      %p263 = pneg %p257
      %p264 = scmp.eq.s32.totalorder %s28, 7
      %p265 = por %p263, %p264
      %p266 = scmp.ne.s32.totalorder %s258, %s261
      %p267 = scmp.eq.s32.totalorder %s28, 0
      %p268 = por %p266, %p267
      %p269 = scmp.ne.s32.totalorder %s258, %s261
      %p270 = scmp.eq.s32.totalorder %s33, 7
      %p271 = por %p269, %p270
      %p272 = scmp.ne.s32.totalorder %s261, %s262
      %p273 = scmp.eq.s32.totalorder %s33, 0
      %p274 = por %p272, %p273
      %p275 = scmp.ne.s32.totalorder %s261, %s262
      %p276 = scmp.eq.s32.totalorder %s34, 7
      %p277 = por %p275, %p276
      %p279 = scmp.ne.s32.totalorder %s262, %s278
      %p280 = scmp.eq.s32.totalorder %s34, 0
      %p281 = por %p279, %p280
      %s282 = ssub.s32 %s36, %s43
      %p283 = scmp.eq.s32.totalorder %s282, 0
      %s285 = sadd.s32 %s284, 1
      %s286 = scalar_select %p283, %s284, %s285
      %p289 = pneg %p283
      %p290 = scmp.eq.s32.totalorder %s28, 7
      %p291 = por %p289, %p290
      %p292 = scmp.ne.s32.totalorder %s284, %s287
      %p293 = scmp.eq.s32.totalorder %s28, 0
      %p294 = por %p292, %p293
      %p295 = scmp.ne.s32.totalorder %s284, %s287
      %p296 = scmp.eq.s32.totalorder %s33, 7
      %p297 = por %p295, %p296
      %p298 = scmp.ne.s32.totalorder %s287, %s288
      %p299 = scmp.eq.s32.totalorder %s33, 0
      %p300 = por %p298, %p299
      %p301 = scmp.ne.s32.totalorder %s287, %s288
      %p302 = scmp.eq.s32.totalorder %s34, 7
      %p303 = por %p301, %p302
      %p305 = scmp.ne.s32.totalorder %s288, %s304
      %p306 = scmp.eq.s32.totalorder %s34, 0
      %p307 = por %p305, %p306
      %s308 = ssub.s32 %s36, %s43
      %p309 = scmp.eq.s32.totalorder %s308, 0
      %s311 = sadd.s32 %s310, 1
      %s312 = scalar_select %p309, %s310, %s311
      %p315 = pneg %p309
      %p316 = scmp.eq.s32.totalorder %s28, 7
      %p317 = por %p315, %p316
      %p318 = scmp.ne.s32.totalorder %s310, %s313
      %p319 = scmp.eq.s32.totalorder %s28, 0
      %p320 = por %p318, %p319
      %p321 = scmp.ne.s32.totalorder %s310, %s313
      %p322 = scmp.eq.s32.totalorder %s33, 7
      %p323 = por %p321, %p322
      %p324 = scmp.ne.s32.totalorder %s313, %s314
      %p325 = scmp.eq.s32.totalorder %s33, 0
      %p326 = por %p324, %p325
      %p327 = scmp.ne.s32.totalorder %s313, %s314
      %p328 = scmp.eq.s32.totalorder %s34, 7
      %p329 = por %p327, %p328
      %p331 = scmp.ne.s32.totalorder %s314, %s330
      %p332 = scmp.eq.s32.totalorder %s34, 0
      %p333 = por %p331, %p332
      %s335 = sadd.s32 %s334, 1
      %p338 = scmp.eq.s32.totalorder %s28, 7
      %p339 = scmp.ne.s32.totalorder %s334, %s336
      %p340 = scmp.eq.s32.totalorder %s28, 0
      %p341 = por %p339, %p340
      %p342 = scmp.ne.s32.totalorder %s334, %s336
      %p343 = scmp.eq.s32.totalorder %s33, 7
      %p344 = por %p342, %p343
      %p345 = scmp.ne.s32.totalorder %s336, %s337
      %p346 = scmp.eq.s32.totalorder %s33, 0
      %p347 = por %p345, %p346
      %p348 = scmp.ne.s32.totalorder %s336, %s337
      %p349 = scmp.eq.s32.totalorder %s34, 7
      %p350 = por %p348, %p349
      %p352 = scmp.ne.s32.totalorder %s337, %s351
      %p353 = scmp.eq.s32.totalorder %s34, 0
      %p354 = por %p352, %p353
      %s356 = sadd.s32 %s355, 1
      %p359 = scmp.eq.s32.totalorder %s28, 7
      %p360 = scmp.ne.s32.totalorder %s355, %s357
      %p361 = scmp.eq.s32.totalorder %s28, 0
      %p362 = por %p360, %p361
      %p363 = scmp.ne.s32.totalorder %s355, %s357
      %p364 = scmp.eq.s32.totalorder %s33, 7
      %p365 = por %p363, %p364
      %p366 = scmp.ne.s32.totalorder %s357, %s358
      %p367 = scmp.eq.s32.totalorder %s33, 0
      %p368 = por %p366, %p367
      %p369 = scmp.ne.s32.totalorder %s357, %s358
      %p370 = scmp.eq.s32.totalorder %s34, 7
      %p371 = por %p369, %p370
      %p373 = scmp.ne.s32.totalorder %s358, %s372
      %p374 = scmp.eq.s32.totalorder %s34, 0
      %p375 = por %p373, %p374
      %s377 = sadd.s32 %s376, 1
      %p380 = scmp.eq.s32.totalorder %s28, 7
      %p381 = scmp.ne.s32.totalorder %s376, %s378
      %p382 = scmp.eq.s32.totalorder %s28, 0
      %p383 = por %p381, %p382
      %p384 = scmp.ne.s32.totalorder %s376, %s378
      %p385 = scmp.eq.s32.totalorder %s33, 7
      %p386 = por %p384, %p385
      %p387 = scmp.ne.s32.totalorder %s378, %s379
      %p388 = scmp.eq.s32.totalorder %s33, 0
      %p389 = por %p387, %p388
      %p390 = scmp.ne.s32.totalorder %s378, %s379
      %p391 = scmp.eq.s32.totalorder %s34, 7
      %p392 = por %p390, %p391
      %p394 = scmp.ne.s32.totalorder %s379, %s393
      %p395 = scmp.eq.s32.totalorder %s34, 0
      %p396 = por %p394, %p395
      %s397 = ssub.s32 %s36, %s43
      %s398 = ssub.s32 %s35, %s47
      %s399 = sor.u32 %s397, %s398
      %p400 = scmp.eq.s32.totalorder %s399, 0
      %s402 = sadd.s32 %s401, 1
      %s403 = scalar_select %p400, %s401, %s402
      %p406 = pneg %p400
      %p407 = scmp.eq.s32.totalorder %s28, 7
      %p408 = por %p406, %p407
      %p409 = scmp.ne.s32.totalorder %s401, %s404
      %p410 = scmp.eq.s32.totalorder %s28, 0
      %p411 = por %p409, %p410
      %p412 = scmp.ne.s32.totalorder %s401, %s404
      %p413 = scmp.eq.s32.totalorder %s33, 7
      %p414 = por %p412, %p413
      %p415 = scmp.ne.s32.totalorder %s404, %s405
      %p416 = scmp.eq.s32.totalorder %s33, 0
      %p417 = por %p415, %p416
      %p418 = scmp.ne.s32.totalorder %s404, %s405
      %p419 = scmp.eq.s32.totalorder %s34, 7
      %p420 = por %p418, %p419
      %p422 = scmp.ne.s32.totalorder %s405, %s421
      %p423 = scmp.eq.s32.totalorder %s34, 0
      %p424 = por %p422, %p423
      %s425 = ssub.s32 %s35, %s47
      %p426 = scmp.eq.s32.totalorder %s425, 0
      %s428 = sadd.s32 %s427, 1
      %s429 = scalar_select %p426, %s427, %s428
      %p432 = pneg %p426
      %p433 = scmp.eq.s32.totalorder %s28, 7
      %p434 = por %p432, %p433
      %p435 = scmp.ne.s32.totalorder %s427, %s430
      %p436 = scmp.eq.s32.totalorder %s28, 0
      %p437 = por %p435, %p436
      %p438 = scmp.ne.s32.totalorder %s427, %s430
      %p439 = scmp.eq.s32.totalorder %s33, 7
      %p440 = por %p438, %p439
      %p441 = scmp.ne.s32.totalorder %s430, %s431
      %p442 = scmp.eq.s32.totalorder %s33, 0
      %p443 = por %p441, %p442
      %p444 = scmp.ne.s32.totalorder %s430, %s431
      %p445 = scmp.eq.s32.totalorder %s34, 7
      %p446 = por %p444, %p445
      %p448 = scmp.ne.s32.totalorder %s431, %s447
      %p449 = scmp.eq.s32.totalorder %s34, 0
      %p450 = por %p448, %p449
      %p451 = scmp.le.s32.totalorder 1, %s28
      %p452 = scmp.lt.s32.totalorder %s28, 9
      %p453 = pnand %p451, %p452
      %p454 = pneg %p453
      // Predicated region
      $region9: #{decoder_layer1_forward.3} parent=5 // pred_check
        _
      $region10: #{decoder_layer1_forward.3} parent=5 // pred_check_branch
        %456 = sbr.rel (%p453) target = $region12
      $region11: #{decoder_layer1_forward.3} parent=5 // pred_region
        %s457 = ssub.s32 %s28, 1
        // Predicated region
        $region13: #{decoder_layer1_forward.3} parent=11 // pred_check
          %p458 = pneg %p347
        $region14: #{decoder_layer1_forward.3} parent=11 // pred_check_branch
          %460 = sbr.rel (%p458) target = $region16
        $region15: #{decoder_layer1_forward.3} parent=11 // pred_region
          _
        $region16: #{decoder_layer1_forward.3} parent=11 // pred_fallthru
          _
        // Predicated region
        $region17: #{decoder_layer1_forward.3} parent=11 // pred_check
          %p461 = pneg %p368
        $region18: #{decoder_layer1_forward.3} parent=11 // pred_check_branch
          %463 = sbr.rel (%p461) target = $region20
        $region19: #{decoder_layer1_forward.3} parent=11 // pred_region
          _
        $region20: #{decoder_layer1_forward.3} parent=11 // pred_fallthru
          _
        // Predicated region
        $region21: #{decoder_layer1_forward.3} parent=11 // pred_check
          %p464 = pneg %p389
        $region22: #{decoder_layer1_forward.3} parent=11 // pred_check_branch
          %466 = sbr.rel (%p464) target = $region24
        $region23: #{decoder_layer1_forward.3} parent=11 // pred_region
          _
        $region24: #{decoder_layer1_forward.3} parent=11 // pred_fallthru
          _
      $region12: #{decoder_layer1_forward.3} parent=5 // pred_fallthru
        _
      %p467 = scmp.lt.s32.totalorder %s28, 8
      // Predicated region
      $region25: #{decoder_layer1_forward.3} parent=5 // pred_check
        %p468 = pneg %p467
      $region26: #{decoder_layer1_forward.3} parent=5 // pred_check_branch
        %470 = sbr.rel (%p468) target = $region28
      $region27: #{decoder_layer1_forward.3} parent=5 // pred_region
        // Predicated region
        $region29: #{decoder_layer1_forward.3} parent=27 // pred_check
          %p471 = pneg %p60
        $region30: #{decoder_layer1_forward.3} parent=27 // pred_check_branch
          %473 = sbr.rel (%p471) target = $region32
        $region31: #{decoder_layer1_forward.3} parent=27 // pred_region
          %p474 = scmp.lt.s32.totalorder %s35, 1
          %s475 = scalar_select %p474, %s35, 1
          %s476 = smul.addr %s475, 8
          %s477 = scalar_lea.vmem %s0, %s476
        $region32: #{decoder_layer1_forward.3} parent=27 // pred_fallthru
          _
        // Predicated region
        $region33: #{decoder_layer1_forward.3} parent=27 // pred_check
          %p478 = pneg %p86
        $region34: #{decoder_layer1_forward.3} parent=27 // pred_check_branch
          %480 = sbr.rel (%p478) target = $region36
        $region35: #{decoder_layer1_forward.3} parent=27 // pred_region
          %p481 = scmp.lt.s32.totalorder %s35, 1
          %s482 = scalar_select %p481, %s35, 1
          %s483 = smul.addr %s482, 8
          %s484 = scalar_lea.vmem %s1, %s483
        $region36: #{decoder_layer1_forward.3} parent=27 // pred_fallthru
          _
        // Predicated region
        $region37: #{decoder_layer1_forward.3} parent=27 // pred_check
          %p485 = pneg %p112
        $region38: #{decoder_layer1_forward.3} parent=27 // pred_check_branch
          %487 = sbr.rel (%p485) target = $region40
        $region39: #{decoder_layer1_forward.3} parent=27 // pred_region
          %p488 = scmp.lt.s32.totalorder %s35, 1
          %s489 = scalar_select %p488, %s35, 1
          %s490 = smul.addr %s489, 2
          %s491 = scalar_lea.vmem %s2, %s490
        $region40: #{decoder_layer1_forward.3} parent=27 // pred_fallthru
          _
        // Predicated region
        $region41: #{decoder_layer1_forward.3} parent=27 // pred_check
          %p492 = pneg %p138
        $region42: #{decoder_layer1_forward.3} parent=27 // pred_check_branch
          %494 = sbr.rel (%p492) target = $region44
        $region43: #{decoder_layer1_forward.3} parent=27 // pred_region
          %p495 = scmp.lt.s32.totalorder %s35, 1
          %s496 = scalar_select %p495, %s35, 1
          %s497 = smul.addr %s496, 8
          %s498 = scalar_lea.vmem %s3, %s497
        $region44: #{decoder_layer1_forward.3} parent=27 // pred_fallthru
          _
        // Predicated region
        $region45: #{decoder_layer1_forward.3} parent=27 // pred_check
          %p499 = pneg %p164
        $region46: #{decoder_layer1_forward.3} parent=27 // pred_check_branch
          %501 = sbr.rel (%p499) target = $region48
        $region47: #{decoder_layer1_forward.3} parent=27 // pred_region
          %p502 = scmp.lt.s32.totalorder %s36, 3
          %s503 = scalar_select %p502, %s36, 3
          %s504 = smul.addr %s503, 4
          %s505 = smul.addr %s504, 8
          %s506 = scalar_lea.vmem %s4, %s505
        $region48: #{decoder_layer1_forward.3} parent=27 // pred_fallthru
          _
        // Predicated region
        $region49: #{decoder_layer1_forward.3} parent=27 // pred_check
          %p507 = pneg %p190
        $region50: #{decoder_layer1_forward.3} parent=27 // pred_check_branch
          %509 = sbr.rel (%p507) target = $region52
        $region51: #{decoder_layer1_forward.3} parent=27 // pred_region
          %p510 = scmp.lt.s32.totalorder %s36, 3
          %s511 = scalar_select %p510, %s36, 3
          %s512 = scalar_lea.vmem %s5, %s511
        $region52: #{decoder_layer1_forward.3} parent=27 // pred_fallthru
          _
        // Predicated region
        $region53: #{decoder_layer1_forward.3} parent=27 // pred_check
          %p513 = pneg %p216
        $region54: #{decoder_layer1_forward.3} parent=27 // pred_check_branch
          %515 = sbr.rel (%p513) target = $region56
        $region55: #{decoder_layer1_forward.3} parent=27 // pred_region
          %p516 = scmp.lt.s32.totalorder %s36, 3
          %s517 = scalar_select %p516, %s36, 3
          %s518 = smul.addr %s517, 4
          %s519 = smul.addr %s518, 8
          %s520 = scalar_lea.vmem %s6, %s519
        $region56: #{decoder_layer1_forward.3} parent=27 // pred_fallthru
          _
        // Predicated region
        $region57: #{decoder_layer1_forward.3} parent=27 // pred_check
          %p521 = pneg %p242
        $region58: #{decoder_layer1_forward.3} parent=27 // pred_check_branch
          %523 = sbr.rel (%p521) target = $region60
        $region59: #{decoder_layer1_forward.3} parent=27 // pred_region
          %p524 = scmp.lt.s32.totalorder %s36, 3
          %s525 = scalar_select %p524, %s36, 3
          %s526 = scalar_lea.vmem %s7, %s525
        $region60: #{decoder_layer1_forward.3} parent=27 // pred_fallthru
          _
        // Predicated region
        $region61: #{decoder_layer1_forward.3} parent=27 // pred_check
          %p527 = pneg %p268
        $region62: #{decoder_layer1_forward.3} parent=27 // pred_check_branch
          %529 = sbr.rel (%p527) target = $region64
        $region63: #{decoder_layer1_forward.3} parent=27 // pred_region
          %p530 = scmp.lt.s32.totalorder %s36, 3
          %s531 = scalar_select %p530, %s36, 3
          %s532 = smul.addr %s531, 4
          %s533 = smul.addr %s532, 8
          %s534 = scalar_lea.vmem %s8, %s533
        $region64: #{decoder_layer1_forward.3} parent=27 // pred_fallthru
          _
        // Predicated region
        $region65: #{decoder_layer1_forward.3} parent=27 // pred_check
          %p535 = pneg %p294
        $region66: #{decoder_layer1_forward.3} parent=27 // pred_check_branch
          %537 = sbr.rel (%p535) target = $region68
        $region67: #{decoder_layer1_forward.3} parent=27 // pred_region
          %p538 = scmp.lt.s32.totalorder %s36, 3
          %s539 = scalar_select %p538, %s36, 3
          %s540 = scalar_lea.vmem %s9, %s539
        $region68: #{decoder_layer1_forward.3} parent=27 // pred_fallthru
          _
        // Predicated region
        $region69: #{decoder_layer1_forward.3} parent=27 // pred_check
          %p541 = pneg %p320
        $region70: #{decoder_layer1_forward.3} parent=27 // pred_check_branch
          %543 = sbr.rel (%p541) target = $region72
        $region71: #{decoder_layer1_forward.3} parent=27 // pred_region
          %p544 = scmp.lt.s32.totalorder %s36, 3
          %s545 = scalar_select %p544, %s36, 3
          %s546 = smul.addr %s545, 8
          %s547 = scalar_lea.vmem %s10, %s546
        $region72: #{decoder_layer1_forward.3} parent=27 // pred_fallthru
          _
      $region28: #{decoder_layer1_forward.3} parent=5 // pred_fallthru
        _
      %p548 = scmp.le.s32.totalorder 1, %s28
      %p549 = scmp.lt.s32.totalorder %s28, 9
      %p550 = pnand %p548, %p549
      %p551 = pneg %p550
      // Predicated region
      $region73: #{decoder_layer1_forward.3} parent=5 // pred_check
        _
      $region74: #{decoder_layer1_forward.3} parent=5 // pred_check_branch
        %553 = sbr.rel (%p550) target = $region76
      $region75: #{decoder_layer1_forward.3} parent=5 // pred_region
        %s554 = ssub.s32 %s28, 1
        %p555 = scmp.lt.s32.totalorder %s37, 1
        %s556 = scalar_select %p555, %s37, 1
        %s557 = smul.addr %s556, 8
        %s558 = scalar_lea.vmem %s0, %s557
        %p559 = pneg %p66
        %p560 = pneg %p63
        %p561 = scmp.lt.s32.totalorder %s37, 1
        %s562 = scalar_select %p561, %s37, 1
        %s563 = smul.addr %s562, 8
        %s564 = scalar_lea.vmem %s1, %s563
        %p565 = pneg %p92
        %p566 = pneg %p89
        %p567 = scmp.lt.s32.totalorder %s37, 1
        %s568 = scalar_select %p567, %s37, 1
        %s569 = smul.addr %s568, 2
        %s570 = scalar_lea.vmem %s2, %s569
        %p571 = pneg %p118
        %p572 = pneg %p115
        %p573 = scmp.lt.s32.totalorder %s37, 1
        %s574 = scalar_select %p573, %s37, 1
        %s575 = smul.addr %s574, 8
        %s576 = scalar_lea.vmem %s3, %s575
        %p577 = pneg %p144
        %p578 = pneg %p141
        %p579 = scmp.lt.s32.totalorder %s38, 3
        %s580 = scalar_select %p579, %s38, 3
        %s581 = smul.addr %s580, 4
        %s582 = smul.addr %s581, 8
        %s583 = scalar_lea.vmem %s4, %s582
        %p584 = pneg %p170
        %p585 = pneg %p167
        %p586 = scmp.lt.s32.totalorder %s38, 3
        %s587 = scalar_select %p586, %s38, 3
        %s588 = scalar_lea.vmem %s5, %s587
        %p589 = pneg %p196
        %p590 = pneg %p193
        %p591 = scmp.lt.s32.totalorder %s38, 3
        %s592 = scalar_select %p591, %s38, 3
        %s593 = smul.addr %s592, 4
        %s594 = smul.addr %s593, 8
        %s595 = scalar_lea.vmem %s6, %s594
        %p596 = pneg %p222
        %p597 = pneg %p219
        %p598 = scmp.lt.s32.totalorder %s38, 3
        %s599 = scalar_select %p598, %s38, 3
        %s600 = scalar_lea.vmem %s7, %s599
        %p601 = pneg %p248
        %p602 = pneg %p245
        %p603 = scmp.lt.s32.totalorder %s38, 3
        %s604 = scalar_select %p603, %s38, 3
        %s605 = smul.addr %s604, 4
        %s606 = smul.addr %s605, 8
        %s607 = scalar_lea.vmem %s8, %s606
        %p608 = pneg %p274
        %p609 = pneg %p271
        %p610 = scmp.lt.s32.totalorder %s38, 3
        %s611 = scalar_select %p610, %s38, 3
        %s612 = scalar_lea.vmem %s9, %s611
        %p613 = pneg %p300
        %p614 = pneg %p297
        %p615 = scmp.lt.s32.totalorder %s38, 3
        %s616 = scalar_select %p615, %s38, 3
        %s617 = smul.addr %s616, 8
        %s618 = scalar_lea.vmem %s10, %s617
        %p619 = pneg %p326
        %p620 = pneg %p323
        %p621 = pneg %p347
        %p622 = pneg %p344
        %p623 = pneg %p368
        %p624 = pneg %p365
        %p625 = pneg %p389
        %p626 = pneg %p386
        %p627 = pneg %p417
        %p628 = pneg %p414
        %s629 = sand.u32 %s404, 1
        %s630 = scalar_lea.sflag [#allocation4], %s629
        %s631 = sand.u32 %s404, 1
        %s632 = smul.addr %s631, 8
        %s633 = scalar_lea.vmem [#allocation3], %s632
        %p634 = pneg %p443
        %p635 = pneg %p440
        %s636 = sand.u32 %s430, 1
        %s637 = scalar_lea.sflag [#allocation6], %s636
        %s638 = sand.u32 %s430, 1
        %s639 = smul.addr %s638, 8
        %s640 = scalar_lea.vmem [#allocation5], %s639
        %p641 = scmp.lt.s32.totalorder %s37, 1
        %s642 = scalar_select %p641, %s37, 1
        %s643 = smul.addr %s642, 8
        %s644 = scalar_lea.vmem %s0, %s643
        %p645 = scmp.lt.s32.totalorder %s37, 1
        %s646 = scalar_select %p645, %s37, 1
        %s647 = smul.addr %s646, 8
        %s648 = scalar_lea.vmem %s1, %s647
        %p649 = scmp.lt.s32.totalorder %s37, 1
        %s650 = scalar_select %p649, %s37, 1
        %s651 = smul.addr %s650, 2
        %s652 = scalar_lea.vmem %s2, %s651
        %p653 = scmp.lt.s32.totalorder %s37, 1
        %s654 = scalar_select %p653, %s37, 1
        %s655 = smul.addr %s654, 8
        %s656 = scalar_lea.vmem %s3, %s655
        %p657 = scmp.lt.s32.totalorder %s38, 3
        %s658 = scalar_select %p657, %s38, 3
        %s659 = smul.addr %s658, 4
        %s660 = smul.addr %s659, 8
        %s661 = scalar_lea.vmem %s4, %s660
        %p662 = scmp.lt.s32.totalorder %s38, 3
        %s663 = scalar_select %p662, %s38, 3
        %s664 = scalar_lea.vmem %s5, %s663
        %p665 = scmp.lt.s32.totalorder %s38, 3
        %s666 = scalar_select %p665, %s38, 3
        %s667 = smul.addr %s666, 4
        %s668 = smul.addr %s667, 8
        %s669 = scalar_lea.vmem %s6, %s668
        %p670 = scmp.lt.s32.totalorder %s38, 3
        %s671 = scalar_select %p670, %s38, 3
        %s672 = scalar_lea.vmem %s7, %s671
        %p673 = scmp.lt.s32.totalorder %s38, 3
        %s674 = scalar_select %p673, %s38, 3
        %s675 = smul.addr %s674, 4
        %s676 = smul.addr %s675, 8
        %s677 = scalar_lea.vmem %s8, %s676
        %p678 = scmp.lt.s32.totalorder %s38, 3
        %s679 = scalar_select %p678, %s38, 3
        %s680 = scalar_lea.vmem %s9, %s679
        %p681 = scmp.lt.s32.totalorder %s38, 3
        %s682 = scalar_select %p681, %s38, 3
        %s683 = smul.addr %s682, 8
        %s684 = scalar_lea.vmem %s10, %s683
        %v687 = vld [vmem:[%s644] sm:$0xff]
        %v688 = vld [vmem:[%s648] sm:$0xff]
        %v689 = vld [vmem:[%s661] sm:$0xff]
        %v690 = vld [vmem:[%s661 + $0x8] sm:$0xff]
        %v691 = vld [vmem:[%s661 + $0x10] sm:$0xff]
        %v692 = vld [vmem:[%s661 + $0x18] sm:$0xff]
        %v693 = vld [vmem:[%s664] sm:$0x1]
        %v695 = vlaneseq
        %v696 = vshrl.u32 %v695, 7
        %v697 = vsub.s32 0, %v696
        %v698 = vrot.slane %v693, %v697
        %vm700 = vcmask 261120
        %v702 = vsel %vm700, %v687, 0
        %704 = vmatprep.subr.mxu0 0.0
        %705 = vmatpush1.msra.mxu0 %v689
        %706 = vmatprep.subr.mxu0 0.0
        %707 = vmatpush1.msra.mxu0 %v690
        %708 = vmatprep.subr.mxu0 0.0
        %709 = vmatpush1.msra.mxu0 %v691
        %710 = vmatprep.subr.mxu0 0.0
        %711 = vmatpush1.msra.mxu0 %v692
        %712 = vmatprep.subr.mxu0 0.0
        %713 = vmatpush1.msra.mxu0 0.0
        %714 = vmatprep.subr.mxu0 0.0
        %715 = vmatpush1.msra.mxu0 0.0
        %716 = vmatprep.subr.mxu0 0.0
        %717 = vmatpush1.msra.mxu0 0.0
        %718 = vmatprep.subr.mxu0 0.0
        %719 = vmatpush1.msra.mxu0 0.0
        %720 = vmatprep.subr.mxu0 0.0
        %721 = vmatpush1.msra.mxu0 0.0
        %722 = vmatprep.subr.mxu0 0.0
        %723 = vmatpush1.msra.mxu0 0.0
        %724 = vmatprep.subr.mxu0 0.0
        %725 = vmatpush1.msra.mxu0 0.0
        %726 = vmatprep.subr.mxu0 0.0
        %727 = vmatpush1.msra.mxu0 0.0
        %728 = vmatprep.subr.mxu0 0.0
        %729 = vmatpush1.msra.mxu0 0.0
        %730 = vmatprep.subr.mxu0 0.0
        %731 = vmatpush1.msra.mxu0 0.0
        %732 = vmatprep.subr.mxu0 0.0
        %733 = vmatpush1.msra.mxu0 0.0
        %734 = vmatprep.subr.mxu0 0.0
        %735 = vmatpush1.msra.mxu0 0.0
        %736 = vmatprep.subr.mxu0 0.0
        %737 = vmatpush1.msra.mxu0 0.0
        %738 = vmatprep.subr.mxu0 0.0
        %739 = vmatpush1.msra.mxu0 0.0
        %740 = vmatprep.subr.mxu0 0.0
        %741 = vmatpush1.msra.mxu0 0.0
        %742 = vmatprep.subr.mxu0 0.0
        %743 = vmatpush1.msra.mxu0 0.0
        %744 = vmatprep.subr.mxu0 0.0
        %745 = vmatpush1.msra.mxu0 0.0
        %746 = vmatprep.subr.mxu0 0.0
        %747 = vmatpush1.msra.mxu0 0.0
        %748 = vmatprep.subr.mxu0 0.0
        %749 = vmatpush1.msra.mxu0 0.0
        %750 = vmatprep.subr.mxu0 0.0
        %751 = vmatpush1.msra.mxu0 0.0
        %752 = vmatprep.subr.mxu0 0.0
        %753 = vmatpush1.msra.mxu0 0.0
        %754 = vmatprep.subr.mxu0 0.0
        %755 = vmatpush1.msra.mxu0 0.0
        %756 = vmatprep.subr.mxu0 0.0
        %757 = vmatpush1.msra.mxu0 0.0
        %758 = vmatprep.subr.mxu0 0.0
        %759 = vmatpush1.msra.mxu0 0.0
        %760 = vmatprep.subr.mxu0 0.0
        %761 = vmatpush1.msra.mxu0 0.0
        %762 = vmatprep.subr.mxu0 0.0
        %763 = vmatpush1.msra.mxu0 0.0
        %764 = vmatprep.subr.mxu0 0.0
        %765 = vmatpush1.msra.mxu0 0.0
        %766 = vmatprep.subr.mxu0 0.0
        %767 = vmatpush1.msra.mxu0 0.0
        %768 = vmatprep.mubr.f32.mxu0 0.0
        %769 = vmatmul.mubr.f32.gmra.mrb[0].mxu0 %v702
        %v770 = vpop.f32.mrb[0].mxu0
        %v771 = vadd.f32 %v698, %v770
        %v772 = vpop.f32.mrb[0].mxu0
        %773 = vdwg.mxu0
        %v774 = vld [vmem:[%s669] sm:$0xff]
        %v775 = vld [vmem:[%s669 + $0x8] sm:$0xff]
        %v776 = vld [vmem:[%s669 + $0x10] sm:$0xff]
        %v777 = vld [vmem:[%s669 + $0x18] sm:$0xff]
        %v778 = vld [vmem:[%s672] sm:$0x1]
        %v780 = vlaneseq
        %v781 = vshrl.u32 %v780, 7
        %v782 = vsub.s32 0, %v781
        %v783 = vrot.slane %v778, %v782
        %v786 = vsel %vm700, %v688, 0
        %788 = vmatprep.subr.mxu0 0.0
        %789 = vmatpush1.msra.mxu0 %v774
        %790 = vmatprep.subr.mxu0 0.0
        %791 = vmatpush1.msra.mxu0 %v775
        %792 = vmatprep.subr.mxu0 0.0
        %793 = vmatpush1.msra.mxu0 %v776
        %794 = vmatprep.subr.mxu0 0.0
        %795 = vmatpush1.msra.mxu0 %v777
        %796 = vmatprep.subr.mxu0 0.0
        %797 = vmatpush1.msra.mxu0 0.0
        %798 = vmatprep.subr.mxu0 0.0
        %799 = vmatpush1.msra.mxu0 0.0
        %800 = vmatprep.subr.mxu0 0.0
        %801 = vmatpush1.msra.mxu0 0.0
        %802 = vmatprep.subr.mxu0 0.0
        %803 = vmatpush1.msra.mxu0 0.0
        %804 = vmatprep.subr.mxu0 0.0
        %805 = vmatpush1.msra.mxu0 0.0
        %806 = vmatprep.subr.mxu0 0.0
        %807 = vmatpush1.msra.mxu0 0.0
        %808 = vmatprep.subr.mxu0 0.0
        %809 = vmatpush1.msra.mxu0 0.0
        %810 = vmatprep.subr.mxu0 0.0
        %811 = vmatpush1.msra.mxu0 0.0
        %812 = vmatprep.subr.mxu0 0.0
        %813 = vmatpush1.msra.mxu0 0.0
        %814 = vmatprep.subr.mxu0 0.0
        %815 = vmatpush1.msra.mxu0 0.0
        %816 = vmatprep.subr.mxu0 0.0
        %817 = vmatpush1.msra.mxu0 0.0
        %818 = vmatprep.subr.mxu0 0.0
        %819 = vmatpush1.msra.mxu0 0.0
        %820 = vmatprep.subr.mxu0 0.0
        %821 = vmatpush1.msra.mxu0 0.0
        %822 = vmatprep.subr.mxu0 0.0
        %823 = vmatpush1.msra.mxu0 0.0
        %824 = vmatprep.subr.mxu0 0.0
        %825 = vmatpush1.msra.mxu0 0.0
        %826 = vmatprep.subr.mxu0 0.0
        %827 = vmatpush1.msra.mxu0 0.0
        %828 = vmatprep.subr.mxu0 0.0
        %829 = vmatpush1.msra.mxu0 0.0
        %830 = vmatprep.subr.mxu0 0.0
        %831 = vmatpush1.msra.mxu0 0.0
        %832 = vmatprep.subr.mxu0 0.0
        %833 = vmatpush1.msra.mxu0 0.0
        %834 = vmatprep.subr.mxu0 0.0
        %835 = vmatpush1.msra.mxu0 0.0
        %836 = vmatprep.subr.mxu0 0.0
        %837 = vmatpush1.msra.mxu0 0.0
        %838 = vmatprep.subr.mxu0 0.0
        %839 = vmatpush1.msra.mxu0 0.0
        %840 = vmatprep.subr.mxu0 0.0
        %841 = vmatpush1.msra.mxu0 0.0
        %842 = vmatprep.subr.mxu0 0.0
        %843 = vmatpush1.msra.mxu0 0.0
        %844 = vmatprep.subr.mxu0 0.0
        %845 = vmatpush1.msra.mxu0 0.0
        %846 = vmatprep.subr.mxu0 0.0
        %847 = vmatpush1.msra.mxu0 0.0
        %848 = vmatprep.subr.mxu0 0.0
        %849 = vmatpush1.msra.mxu0 0.0
        %850 = vmatprep.subr.mxu0 0.0
        %851 = vmatpush1.msra.mxu0 0.0
        %852 = vmatprep.mubr.f32.mxu0 0.0
        %853 = vmatmul.mubr.f32.gmra.mrb[0].mxu0 %v786
        %v854 = vpop.f32.mrb[0].mxu0
        %v855 = vadd.f32 %v783, %v854
        %v856 = vpop.f32.mrb[0].mxu0
        %857 = vdwg.mxu0
        %v858 = vld [vmem:[%s677] sm:$0xff]
        %v859 = vld [vmem:[%s677 + $0x8] sm:$0xff]
        %v860 = vld [vmem:[%s677 + $0x10] sm:$0xff]
        %v861 = vld [vmem:[%s677 + $0x18] sm:$0xff]
        %v862 = vld [vmem:[%s680] sm:$0x1]
        %v864 = vlaneseq
        %v865 = vshrl.u32 %v864, 7
        %v866 = vsub.s32 0, %v865
        %v867 = vrot.slane %v862, %v866
        %869 = vmatprep.subr.mxu0 0.0
        %870 = vmatpush1.msra.mxu0 %v858
        %871 = vmatprep.subr.mxu0 0.0
        %872 = vmatpush1.msra.mxu0 %v859
        %873 = vmatprep.subr.mxu0 0.0
        %874 = vmatpush1.msra.mxu0 %v860
        %875 = vmatprep.subr.mxu0 0.0
        %876 = vmatpush1.msra.mxu0 %v861
        %877 = vmatprep.subr.mxu0 0.0
        %878 = vmatpush1.msra.mxu0 0.0
        %879 = vmatprep.subr.mxu0 0.0
        %880 = vmatpush1.msra.mxu0 0.0
        %881 = vmatprep.subr.mxu0 0.0
        %882 = vmatpush1.msra.mxu0 0.0
        %883 = vmatprep.subr.mxu0 0.0
        %884 = vmatpush1.msra.mxu0 0.0
        %885 = vmatprep.subr.mxu0 0.0
        %886 = vmatpush1.msra.mxu0 0.0
        %887 = vmatprep.subr.mxu0 0.0
        %888 = vmatpush1.msra.mxu0 0.0
        %889 = vmatprep.subr.mxu0 0.0
        %890 = vmatpush1.msra.mxu0 0.0
        %891 = vmatprep.subr.mxu0 0.0
        %892 = vmatpush1.msra.mxu0 0.0
        %893 = vmatprep.subr.mxu0 0.0
        %894 = vmatpush1.msra.mxu0 0.0
        %895 = vmatprep.subr.mxu0 0.0
        %896 = vmatpush1.msra.mxu0 0.0
        %897 = vmatprep.subr.mxu0 0.0
        %898 = vmatpush1.msra.mxu0 0.0
        %899 = vmatprep.subr.mxu0 0.0
        %900 = vmatpush1.msra.mxu0 0.0
        %901 = vmatprep.subr.mxu0 0.0
        %902 = vmatpush1.msra.mxu0 0.0
        %903 = vmatprep.subr.mxu0 0.0
        %904 = vmatpush1.msra.mxu0 0.0
        %905 = vmatprep.subr.mxu0 0.0
        %906 = vmatpush1.msra.mxu0 0.0
        %907 = vmatprep.subr.mxu0 0.0
        %908 = vmatpush1.msra.mxu0 0.0
        %909 = vmatprep.subr.mxu0 0.0
        %910 = vmatpush1.msra.mxu0 0.0
        %911 = vmatprep.subr.mxu0 0.0
        %912 = vmatpush1.msra.mxu0 0.0
        %913 = vmatprep.subr.mxu0 0.0
        %914 = vmatpush1.msra.mxu0 0.0
        %915 = vmatprep.subr.mxu0 0.0
        %916 = vmatpush1.msra.mxu0 0.0
        %917 = vmatprep.subr.mxu0 0.0
        %918 = vmatpush1.msra.mxu0 0.0
        %919 = vmatprep.subr.mxu0 0.0
        %920 = vmatpush1.msra.mxu0 0.0
        %921 = vmatprep.subr.mxu0 0.0
        %922 = vmatpush1.msra.mxu0 0.0
        %923 = vmatprep.subr.mxu0 0.0
        %924 = vmatpush1.msra.mxu0 0.0
        %925 = vmatprep.subr.mxu0 0.0
        %926 = vmatpush1.msra.mxu0 0.0
        %927 = vmatprep.subr.mxu0 0.0
        %928 = vmatpush1.msra.mxu0 0.0
        %929 = vmatprep.subr.mxu0 0.0
        %930 = vmatpush1.msra.mxu0 0.0
        %931 = vmatprep.subr.mxu0 0.0
        %932 = vmatpush1.msra.mxu0 0.0
        %933 = vmatprep.mubr.f32.mxu0 0.0
        %934 = vmatmul.mubr.f32.gmra.mrb[0].mxu0 %v786
        %v935 = vpop.f32.mrb[0].mxu0
        %v936 = vadd.f32 %v867, %v935
        %v937 = vpop.f32.mrb[0].mxu0
        %938 = vdwg.mxu0
        %vm939 = vcmask 64512
        %v941 = vsel %vm939, %v771, 0
        %v944 = vsel %vm939, %v855, 0
        %946 = vmatprep.subr.mxu0 0.0
        %947 = vmatpush1.xpose.msra.mxu0 %v944
        %948 = vmatprep.subr.mxu0 0.0
        %949 = vmatpush1.xpose.msra.mxu0 0.0
        %950 = vmatprep.subr.mxu0 0.0
        %951 = vmatpush1.xpose.msra.mxu0 0.0
        %952 = vmatprep.subr.mxu0 0.0
        %953 = vmatpush1.xpose.msra.mxu0 0.0
        %954 = vmatprep.subr.mxu0 0.0
        %955 = vmatpush1.xpose.msra.mxu0 0.0
        %956 = vmatprep.subr.mxu0 0.0
        %957 = vmatpush1.xpose.msra.mxu0 0.0
        %958 = vmatprep.subr.mxu0 0.0
        %959 = vmatpush1.xpose.msra.mxu0 0.0
        %960 = vmatprep.subr.mxu0 0.0
        %961 = vmatpush1.xpose.msra.mxu0 0.0
        %962 = vmatprep.subr.mxu0 0.0
        %963 = vmatpush1.xpose.msra.mxu0 0.0
        %964 = vmatprep.subr.mxu0 0.0
        %965 = vmatpush1.xpose.msra.mxu0 0.0
        %966 = vmatprep.subr.mxu0 0.0
        %967 = vmatpush1.xpose.msra.mxu0 0.0
        %968 = vmatprep.subr.mxu0 0.0
        %969 = vmatpush1.xpose.msra.mxu0 0.0
        %970 = vmatprep.subr.mxu0 0.0
        %971 = vmatpush1.xpose.msra.mxu0 0.0
        %972 = vmatprep.subr.mxu0 0.0
        %973 = vmatpush1.xpose.msra.mxu0 0.0
        %974 = vmatprep.subr.mxu0 0.0
        %975 = vmatpush1.xpose.msra.mxu0 0.0
        %976 = vmatprep.subr.mxu0 0.0
        %977 = vmatpush1.xpose.msra.mxu0 0.0
        %978 = vmatprep.subr.mxu0 0.0
        %979 = vmatpush1.xpose.msra.mxu0 0.0
        %980 = vmatprep.subr.mxu0 0.0
        %981 = vmatpush1.xpose.msra.mxu0 0.0
        %982 = vmatprep.subr.mxu0 0.0
        %983 = vmatpush1.xpose.msra.mxu0 0.0
        %984 = vmatprep.subr.mxu0 0.0
        %985 = vmatpush1.xpose.msra.mxu0 0.0
        %986 = vmatprep.subr.mxu0 0.0
        %987 = vmatpush1.xpose.msra.mxu0 0.0
        %988 = vmatprep.subr.mxu0 0.0
        %989 = vmatpush1.xpose.msra.mxu0 0.0
        %990 = vmatprep.subr.mxu0 0.0
        %991 = vmatpush1.xpose.msra.mxu0 0.0
        %992 = vmatprep.subr.mxu0 0.0
        %993 = vmatpush1.xpose.msra.mxu0 0.0
        %994 = vmatprep.subr.mxu0 0.0
        %995 = vmatpush1.xpose.msra.mxu0 0.0
        %996 = vmatprep.subr.mxu0 0.0
        %997 = vmatpush1.xpose.msra.mxu0 0.0
        %998 = vmatprep.subr.mxu0 0.0
        %999 = vmatpush1.xpose.msra.mxu0 0.0
        %1000 = vmatprep.subr.mxu0 0.0
        %1001 = vmatpush1.xpose.msra.mxu0 0.0
        %1002 = vmatprep.subr.mxu0 0.0
        %1003 = vmatpush1.xpose.msra.mxu0 0.0
        %1004 = vmatprep.subr.mxu0 0.0
        %1005 = vmatpush1.xpose.msra.mxu0 0.0
        %1006 = vmatprep.subr.mxu0 0.0
        %1007 = vmatpush1.xpose.msra.mxu0 0.0
        %1008 = vmatprep.subr.mxu0 0.0
        %1009 = vmatpush1.xpose.msra.mxu0 0.0
        %1010 = vmatprep.mubr.f32.mxu0 0.0
        %1011 = vmatmul.mubr.f32.gmra.mrb[0].mxu0 %v941
        %v1012 = vpop.f32.mrb[0].mxu0
        %v1013 = vadd.f32 0.0, %v1012
        %v1014 = vpop.f32.mrb[0].mxu0
        %1015 = vdwg.mxu0
        %v1016 = vmul.f32 %v1013, 0.35355338
        %v1017 = vld [vmem:[%s652] sm:$0x3]
        %vm1018 = vnez %v1017
        %v1019 = vsel %vm1018, 16843009, 0
        %v1020 = vunpack.c.0.s8 %v1019
        %vm1021 = vcmp.ne.s32.totalorder %v1020, 0
        %v1022 = vsel %vm1021, -1e+30, %v1016
        %v1023 = vsel %vm939, %v1022, -inf
        %1024 = vmax.xlane.f32.xlu0 %v1023
        %v1025 = vpop.xlane.xlu0 %1024
        %v1026 = vsub.f32 %v1022, %v1025
        %v1027 = vmul.f32 %v1026, 1.442695
        %v1028 = vpow.pop %v1027
        %v1029 = vsel %vm939, %v1028, 0.0
        %1030 = vadd.xlane.f32.xlu0 %v1029
        %v1031 = vpop.xlane.xlu0 %1030
        %v1032 = vrcp.pop %v1031
        %v1033 = vmul.f32 %v1028, %v1032
        %1034 = vst.msk [vmem:[%s633] sm:$0xff] %vm939, %v1033
        %v1036 = vsel %vm939, %v1033, 0
        %1038 = vmatprep.subr.mxu0 0.0
        %1039 = vmatpush1.msra.mxu0 %v936
        %1040 = vmatprep.subr.mxu0 0.0
        %1041 = vmatpush1.msra.mxu0 0.0
        %1042 = vmatprep.subr.mxu0 0.0
        %1043 = vmatpush1.msra.mxu0 0.0
        %1044 = vmatprep.subr.mxu0 0.0
        %1045 = vmatpush1.msra.mxu0 0.0
        %1046 = vmatprep.subr.mxu0 0.0
        %1047 = vmatpush1.msra.mxu0 0.0
        %1048 = vmatprep.subr.mxu0 0.0
        %1049 = vmatpush1.msra.mxu0 0.0
        %1050 = vmatprep.subr.mxu0 0.0
        %1051 = vmatpush1.msra.mxu0 0.0
        %1052 = vmatprep.subr.mxu0 0.0
        %1053 = vmatpush1.msra.mxu0 0.0
        %1054 = vmatprep.subr.mxu0 0.0
        %1055 = vmatpush1.msra.mxu0 0.0
        %1056 = vmatprep.subr.mxu0 0.0
        %1057 = vmatpush1.msra.mxu0 0.0
        %1058 = vmatprep.subr.mxu0 0.0
        %1059 = vmatpush1.msra.mxu0 0.0
        %1060 = vmatprep.subr.mxu0 0.0
        %1061 = vmatpush1.msra.mxu0 0.0
        %1062 = vmatprep.subr.mxu0 0.0
        %1063 = vmatpush1.msra.mxu0 0.0
        %1064 = vmatprep.subr.mxu0 0.0
        %1065 = vmatpush1.msra.mxu0 0.0
        %1066 = vmatprep.subr.mxu0 0.0
        %1067 = vmatpush1.msra.mxu0 0.0
        %1068 = vmatprep.subr.mxu0 0.0
        %1069 = vmatpush1.msra.mxu0 0.0
        %1070 = vmatprep.subr.mxu0 0.0
        %1071 = vmatpush1.msra.mxu0 0.0
        %1072 = vmatprep.subr.mxu0 0.0
        %1073 = vmatpush1.msra.mxu0 0.0
        %1074 = vmatprep.subr.mxu0 0.0
        %1075 = vmatpush1.msra.mxu0 0.0
        %1076 = vmatprep.subr.mxu0 0.0
        %1077 = vmatpush1.msra.mxu0 0.0
        %1078 = vmatprep.subr.mxu0 0.0
        %1079 = vmatpush1.msra.mxu0 0.0
        %1080 = vmatprep.subr.mxu0 0.0
        %1081 = vmatpush1.msra.mxu0 0.0
        %1082 = vmatprep.subr.mxu0 0.0
        %1083 = vmatpush1.msra.mxu0 0.0
        %1084 = vmatprep.subr.mxu0 0.0
        %1085 = vmatpush1.msra.mxu0 0.0
        %1086 = vmatprep.subr.mxu0 0.0
        %1087 = vmatpush1.msra.mxu0 0.0
        %1088 = vmatprep.subr.mxu0 0.0
        %1089 = vmatpush1.msra.mxu0 0.0
        %1090 = vmatprep.subr.mxu0 0.0
        %1091 = vmatpush1.msra.mxu0 0.0
        %1092 = vmatprep.subr.mxu0 0.0
        %1093 = vmatpush1.msra.mxu0 0.0
        %1094 = vmatprep.subr.mxu0 0.0
        %1095 = vmatpush1.msra.mxu0 0.0
        %1096 = vmatprep.subr.mxu0 0.0
        %1097 = vmatpush1.msra.mxu0 0.0
        %1098 = vmatprep.subr.mxu0 0.0
        %1099 = vmatpush1.msra.mxu0 0.0
        %1100 = vmatprep.subr.mxu0 0.0
        %1101 = vmatpush1.msra.mxu0 0.0
        %1102 = vmatprep.mubr.f32.mxu0 0.0
        %1103 = vmatmul.mubr.f32.gmra.mrb[0].mxu0 %v1036
        %v1104 = vpop.f32.mrb[0].mxu0
        %v1105 = vadd.f32 0.0, %v1104
        %v1106 = vpop.f32.mrb[0].mxu0
        %1107 = vdwg.mxu0
        %v1108 = vld [vmem:[%s684] sm:$0xff]
        %v1110 = vsel %vm939, %v1105, 0
        %1112 = vmatprep.subr.mxu0 0.0
        %1113 = vmatpush1.msra.mxu0 %v1108
        %1114 = vmatprep.subr.mxu0 0.0
        %1115 = vmatpush1.msra.mxu0 0.0
        %1116 = vmatprep.subr.mxu0 0.0
        %1117 = vmatpush1.msra.mxu0 0.0
        %1118 = vmatprep.subr.mxu0 0.0
        %1119 = vmatpush1.msra.mxu0 0.0
        %1120 = vmatprep.subr.mxu0 0.0
        %1121 = vmatpush1.msra.mxu0 0.0
        %1122 = vmatprep.subr.mxu0 0.0
        %1123 = vmatpush1.msra.mxu0 0.0
        %1124 = vmatprep.subr.mxu0 0.0
        %1125 = vmatpush1.msra.mxu0 0.0
        %1126 = vmatprep.subr.mxu0 0.0
        %1127 = vmatpush1.msra.mxu0 0.0
        %1128 = vmatprep.subr.mxu0 0.0
        %1129 = vmatpush1.msra.mxu0 0.0
        %1130 = vmatprep.subr.mxu0 0.0
        %1131 = vmatpush1.msra.mxu0 0.0
        %1132 = vmatprep.subr.mxu0 0.0
        %1133 = vmatpush1.msra.mxu0 0.0
        %1134 = vmatprep.subr.mxu0 0.0
        %1135 = vmatpush1.msra.mxu0 0.0
        %1136 = vmatprep.subr.mxu0 0.0
        %1137 = vmatpush1.msra.mxu0 0.0
        %1138 = vmatprep.subr.mxu0 0.0
        %1139 = vmatpush1.msra.mxu0 0.0
        %1140 = vmatprep.subr.mxu0 0.0
        %1141 = vmatpush1.msra.mxu0 0.0
        %1142 = vmatprep.subr.mxu0 0.0
        %1143 = vmatpush1.msra.mxu0 0.0
        %1144 = vmatprep.subr.mxu0 0.0
        %1145 = vmatpush1.msra.mxu0 0.0
        %1146 = vmatprep.subr.mxu0 0.0
        %1147 = vmatpush1.msra.mxu0 0.0
        %1148 = vmatprep.subr.mxu0 0.0
        %1149 = vmatpush1.msra.mxu0 0.0
        %1150 = vmatprep.subr.mxu0 0.0
        %1151 = vmatpush1.msra.mxu0 0.0
        %1152 = vmatprep.subr.mxu0 0.0
        %1153 = vmatpush1.msra.mxu0 0.0
        %1154 = vmatprep.subr.mxu0 0.0
        %1155 = vmatpush1.msra.mxu0 0.0
        %1156 = vmatprep.subr.mxu0 0.0
        %1157 = vmatpush1.msra.mxu0 0.0
        %1158 = vmatprep.subr.mxu0 0.0
        %1159 = vmatpush1.msra.mxu0 0.0
        %1160 = vmatprep.subr.mxu0 0.0
        %1161 = vmatpush1.msra.mxu0 0.0
        %1162 = vmatprep.subr.mxu0 0.0
        %1163 = vmatpush1.msra.mxu0 0.0
        %1164 = vmatprep.subr.mxu0 0.0
        %1165 = vmatpush1.msra.mxu0 0.0
        %1166 = vmatprep.subr.mxu0 0.0
        %1167 = vmatpush1.msra.mxu0 0.0
        %1168 = vmatprep.subr.mxu0 0.0
        %1169 = vmatpush1.msra.mxu0 0.0
        %1170 = vmatprep.subr.mxu0 0.0
        %1171 = vmatpush1.msra.mxu0 0.0
        %1172 = vmatprep.subr.mxu0 0.0
        %1173 = vmatpush1.msra.mxu0 0.0
        %1174 = vmatprep.subr.mxu0 0.0
        %1175 = vmatpush1.msra.mxu0 0.0
        %1176 = vmatprep.mubr.f32.mxu0 0.0
        %1177 = vmatmul.mubr.f32.gmra.mrb[0].mxu0 %v1110
        %v1178 = vpop.f32.mrb[0].mxu0
        %v1179 = vadd.f32 0.0, %v1178
        %v1180 = vpop.f32.mrb[0].mxu0
        %1181 = vdwg.mxu0
        %p1182 = scmp.eq.s32.totalorder %s38, 0
        // Predicated region
        $region77: #{decoder_layer1_forward.3} parent=75 // pred_check
          %p1183 = pneg %p1182
        $region78: #{decoder_layer1_forward.3} parent=75 // pred_check_branch
          %1185 = sbr.rel (%p1183) target = $region80
        $region79: #{decoder_layer1_forward.3} parent=75 // pred_region
          %1186 = vst.msk [vmem:[#allocation2] sm:$0xff] %vm700, %v1179
        $region80: #{decoder_layer1_forward.3} parent=75 // pred_fallthru
          _
        %p1187 = scmp.gt.s32.totalorder %s38, 0
        // Predicated region
        $region81: #{decoder_layer1_forward.3} parent=75 // pred_check
          %p1188 = pneg %p1187
        $region82: #{decoder_layer1_forward.3} parent=75 // pred_check_branch
          %1190 = sbr.rel (%p1188) target = $region84
        $region83: #{decoder_layer1_forward.3} parent=75 // pred_region
          %v1191 = vld [vmem:[#allocation2] sm:$0xff]
          %v1192 = vadd.f32 %v1191, %v1179
          %1193 = vst.msk [vmem:[#allocation2] sm:$0xff] %vm700, %v1192
        $region84: #{decoder_layer1_forward.3} parent=75 // pred_fallthru
          _
        %p1194 = scmp.eq.s32.totalorder %s38, 3
        // Predicated region
        $region85: #{decoder_layer1_forward.3} parent=75 // pred_check
          %p1195 = pneg %p1194
        $region86: #{decoder_layer1_forward.3} parent=75 // pred_check_branch
          %1197 = sbr.rel (%p1195) target = $region88
        $region87: #{decoder_layer1_forward.3} parent=75 // pred_region
          %v1198 = vld [vmem:[#allocation2] sm:$0xff]
          %v1199 = vld [vmem:[%s11] sm:$0x1]
          %v1201 = vlaneseq
          %v1202 = vshrl.u32 %v1201, 7
          %v1203 = vsub.s32 0, %v1202
          %v1204 = vrot.slane %v1199, %v1203
          %v1206 = vadd.f32 %v1198, %v1204
          %v1207 = vadd.f32 %v1206, %v687
          %v1208 = vsel %vm700, %v1207, 0.0
          %1209 = vadd.xlane.f32.xlu0 %v1208
          %v1210 = vpop.xlane.xlu0 %1209
          %v1211 = vrcp.pop 32.0
          %v1212 = vmul.f32 %v1210, %v1211
          %v1213 = vsub.f32 %v1207, %v1212
          %v1214 = vmul.f32 %v1213, %v1213
          %v1215 = vsel %vm700, %v1214, 0.0
          %1216 = vadd.xlane.f32.xlu0 %v1215
          %v1217 = vpop.xlane.xlu0 %1216
          %v1218 = vmul.f32 %v1217, %v1211
          %v1219 = vadd.f32 %v1218, 1e-05
          %v1220 = vrsqrt.pop %v1219
          %v1221 = vmul.f32 %v1213, %v1220
          %v1222 = vld [vmem:[%s12] sm:$0x1]
          %v1224 = vlaneseq
          %v1225 = vshrl.u32 %v1224, 7
          %v1226 = vsub.s32 0, %v1225
          %v1227 = vrot.slane %v1222, %v1226
          %v1229 = vmul.f32 %v1221, %v1227
          %v1230 = vld [vmem:[%s13] sm:$0x1]
          %v1232 = vlaneseq
          %v1233 = vshrl.u32 %v1232, 7
          %v1234 = vsub.s32 0, %v1233
          %v1235 = vrot.slane %v1230, %v1234
          %v1237 = vadd.f32 %v1229, %v1235
          %v1238 = vld [vmem:[%s656] sm:$0xff]
          %1240 = vset.pattern.permute.xlu0 0
          %1241 = vperm.xlu0 %1240, %v1238
          %v1242 = vpop.permute.xlu0 %1241
          %v1244 = vmul.f32 %v1237, %v1242
          %1245 = vst.msk [vmem:[%s640] sm:$0xff] %vm700, %v1244
        $region88: #{decoder_layer1_forward.3} parent=75 // pred_fallthru
          _
        %s1246 = sand.u32 %s404, 1
        %s1247 = scalar_lea.sflag [#allocation4], %s1246
        %s1248 = sand.u32 %s404, 1
        %s1249 = smul.addr %s1248, 8
        %s1250 = scalar_lea.vmem [#allocation3], %s1249
        %s1251 = sand.u32 %s430, 1
        %s1252 = scalar_lea.sflag [#allocation6], %s1251
        %s1253 = sand.u32 %s430, 1
        %s1254 = smul.addr %s1253, 8
        %s1255 = scalar_lea.vmem [#allocation5], %s1254
        // Predicated region
        $region89: #{decoder_layer1_forward.3} parent=75 // pred_check
          %p1256 = pneg %p414
        $region90: #{decoder_layer1_forward.3} parent=75 // pred_check_branch
          %1258 = sbr.rel (%p1256) target = $region92
        $region91: #{decoder_layer1_forward.3} parent=75 // pred_region
          %s1260 = ssub.s32 128, 128
          %1261 = vsyncadd %s1247, %s1260
          %s1262 = smul.addr %s38, 2
          %s1263 = sadd.s32 %s37, %s1262
          %s1264 = smul.addr %s1263, 128
          %s1265 = scalar_lea.hbm %s14, %s1264
          %s1267 = sshll.u32 %s1250, 4
          %s1268 = int_to_ptr.vmem [resolvable:$true] %s1267
          %1270 = dma.vmem_to_hbm [thread:$0]  %s1268, 128, %s1265, %s1247
        $region92: #{decoder_layer1_forward.3} parent=75 // pred_fallthru
          _
        // Predicated region
        $region93: #{decoder_layer1_forward.3} parent=75 // pred_check
          %p1271 = pneg %p440
        $region94: #{decoder_layer1_forward.3} parent=75 // pred_check_branch
          %1273 = sbr.rel (%p1271) target = $region96
        $region95: #{decoder_layer1_forward.3} parent=75 // pred_region
          %s1275 = ssub.s32 128, 128
          %1276 = vsyncadd %s1252, %s1275
          %s1277 = smul.addr %s37, 128
          %s1278 = scalar_lea.hbm %s15, %s1277
          %s1280 = sshll.u32 %s1255, 4
          %s1281 = int_to_ptr.vmem [resolvable:$true] %s1280
          %1283 = dma.vmem_to_hbm [thread:$0]  %s1281, 128, %s1278, %s1252
        $region96: #{decoder_layer1_forward.3} parent=75 // pred_fallthru
          _
      $region76: #{decoder_layer1_forward.3} parent=5 // pred_fallthru
        _
      %p1284 = scmp.le.s32.totalorder 2, %s28
      // Predicated region
      $region97: #{decoder_layer1_forward.3} parent=5 // pred_check
        %p1285 = pneg %p1284
      $region98: #{decoder_layer1_forward.3} parent=5 // pred_check_branch
        %1287 = sbr.rel (%p1285) target = $region100
      $region99: #{decoder_layer1_forward.3} parent=5 // pred_region
        %s1288 = ssub.s32 %s28, 2
        // Predicated region
        $region101: #{decoder_layer1_forward.3} parent=99 // pred_check
          %p1289 = pneg %p420
        $region102: #{decoder_layer1_forward.3} parent=99 // pred_check_branch
          %1291 = sbr.rel (%p1289) target = $region104
        $region103: #{decoder_layer1_forward.3} parent=99 // pred_region
          %s1292 = sand.u32 %s405, 1
          %s1293 = scalar_lea.sflag [#allocation4], %s1292
          %s1294 = sand.u32 %s405, 1
          %s1295 = smul.addr %s1294, 8
          %s1296 = scalar_lea.vmem [#allocation3], %s1295
          %1297 = dma.done %s1293, 128
        $region104: #{decoder_layer1_forward.3} parent=99 // pred_fallthru
          _
        // Predicated region
        $region105: #{decoder_layer1_forward.3} parent=99 // pred_check
          %p1298 = pneg %p446
        $region106: #{decoder_layer1_forward.3} parent=99 // pred_check_branch
          %1300 = sbr.rel (%p1298) target = $region108
        $region107: #{decoder_layer1_forward.3} parent=99 // pred_region
          %s1301 = sand.u32 %s431, 1
          %s1302 = scalar_lea.sflag [#allocation6], %s1301
          %s1303 = sand.u32 %s431, 1
          %s1304 = smul.addr %s1303, 8
          %s1305 = scalar_lea.vmem [#allocation5], %s1304
          %1306 = dma.done %s1302, 128
        $region108: #{decoder_layer1_forward.3} parent=99 // pred_fallthru
          _
      $region100: #{decoder_layer1_forward.3} parent=5 // pred_fallthru
        _
    $region6: #{decoder_layer1_forward.3} parent=1 // loop_footer
      %s32 = sadd.s32 1, %s28
    $region7: #{decoder_layer1_forward.3} parent=1 // loop_footer_branch
      %27 = sbr.rel target = $region3
    $region8: #{decoder_layer1_forward.3} parent=1 // loop_exit
      _
    %1307 = vsyncpa [#allocation4], 1
    %s1308 = scalar_lea.sflag [#allocation4], 1
    %1309 = vsyncpa %s1308, 1
    %1310 = vsyncpa [#allocation6], 1
    %s1311 = scalar_lea.sflag [#allocation6], 1
    %1312 = vsyncpa %s1311, 1

</llo_original>
